<compile_context>
chip_gen: v7x
topology: tpu7x:2x2x1
jax: 0.10.0
libtpu: 0.0.40
codegen_flags: <defaults>
</compile_context>

<pallas_src>
import math

import jax
import jax.numpy as jnp
from jax import lax
from jax.experimental import pallas as pl
from jax.experimental.pallas import tpu as pltpu

# ---------------- configuration (net_params) ----------------
B = 2            # batch_size (number of graphs)
V = 8            # nodes per graph
N_NODES = B * V
IN_DIM = 16      # in_dim
HIDDEN = 32      # hidden_dim == out_dim
OUT_DIM = 32
HEADS = 4
HEAD_DIM = HIDDEN // HEADS
FFN_DIM = 2 * HIDDEN
N_LAYERS = 2
N_CLASSES = 4
MAX_SEQ = 512    # PositionalEncoder max_seq_len
LN_EPS = 1e-5

SLAB_LANES = 128  # lane width of the packed constant slabs


# ---------------- constant-slab layout (static, shared by packer & kernel) ----------------
def _make_layout(entries, align):
    """entries: [(name, (rows, cols))]; returns ({name: (row_off, rows, cols)}, total_rows)."""
    layout, r = {}, 0
    for name, (rows, cols) in entries:
        assert cols <= SLAB_LANES
        layout[name] = (r, rows, cols)
        r += -(-rows // align) * align
    return layout, max(-(-r // align) * align, align)


def _weight_entries():
    ents = [("emb_w", (IN_DIM, HIDDEN))]
    for l in range(N_LAYERS):
        ents += [(f"wqkv{l}", (HIDDEN, 3 * HIDDEN)),
                 (f"wo{l}",   (HIDDEN, HIDDEN)),
                 (f"w1{l}",   (HIDDEN, FFN_DIM)),
                 (f"w2{l}",   (FFN_DIM, HIDDEN))]
    ents.append(("fc_w", (OUT_DIM, N_CLASSES)))
    return ents


def _vector_entries():
    ents = [("bias_pe", (N_NODES, HIDDEN))]
    for l in range(N_LAYERS):
        ents += [(f"bo{l}",   (1, HIDDEN)),
                 (f"ln1g{l}", (1, HIDDEN)),
                 (f"ln1b{l}", (1, HIDDEN)),
                 (f"b1{l}",   (1, FFN_DIM)),
                 (f"b2{l}",   (1, HIDDEN)),
                 (f"ln2g{l}", (1, HIDDEN)),
                 (f"ln2b{l}", (1, HIDDEN))]
    ents.append(("fc_b", (1, N_CLASSES)))
    return ents


W_LAYOUT, W_ROWS = _make_layout(_weight_entries(), align=16)   # bf16 sublane tile = 16
V_LAYOUT, V_ROWS = _make_layout(_vector_entries(), align=8)    # f32 sublane tile = 8


def _pack_slab(layout, total_rows, arrays, dtype):
    slab = jnp.zeros((total_rows, SLAB_LANES), dtype)
    for name, a in arrays.items():
        r, rows, cols = layout[name]
        assert a.shape == (rows, cols), (name, a.shape, (rows, cols))
        slab = slab.at[r:r + rows, :cols].set(a.astype(dtype))
    return slab


# ---------------- fused kernel ----------------
def fused_forward_kernel(xin_ref, wm_ref, vc_ref, out_ref):
    def wmat(name):                       # static slice of the bf16 weight slab (free)
        r, rows, cols = W_LAYOUT[name]
        return wm_ref[r:r + rows, 0:cols]

    def cvec(name):                       # static slice of the f32 bias/LN/PE slab (free)
        r, rows, cols = V_LAYOUT[name]
        return vc_ref[r:r + rows, 0:cols]

    xin = xin_ref[...]                    # [N, IN_DIM + N] packed activations
    x = xin[:, 0:IN_DIM]                  # node features
    adj = xin[:, IN_DIM:IN_DIM + N_NODES]  # [N, N] block-diagonal edge mask

    # ---- embedding_h_linear + bias + positional encoding (in_feat_dropout = id in eval)
    h = jnp.dot(x.astype(jnp.bfloat16), wmat("emb_w"),
                preferred_element_type=jnp.float32) + cvec("bias_pe")

    # ---- L GraphTransformerLayers, unrolled; all weights stay VMEM-resident
    for l in range(N_LAYERS):
        # -- multi-head attention: single fused QKV matmul (1 MXU push; 1/sqrt(d) folded in)
        qkv = jnp.dot(h.astype(jnp.bfloat16), wmat(f"wqkv{l}"),
                      preferred_element_type=jnp.float32)          # [N, 3*HIDDEN]
        q = jnp.stack([qkv[:, hd * HEAD_DIM:(hd + 1) * HEAD_DIM]
                       for hd in range(HEADS)])                    # [H, N, d]
        k = jnp.stack([qkv[:, HIDDEN + hd * HEAD_DIM:HIDDEN + (hd + 1) * HEAD_DIM]
                       for hd in range(HEADS)])
        v = jnp.stack([qkv[:, 2 * HIDDEN + hd * HEAD_DIM:2 * HIDDEN + (hd + 1) * HEAD_DIM]
                       for hd in range(HEADS)])

        s = jnp.einsum('hqd,hkd->hqk', q, k,
                       preferred_element_type=jnp.float32)         # [H, N, N]
        s = jnp.clip(s, -5.0, 5.0)                                 # DGL scaled_exp clamp
        e = jnp.exp(s) * adj[None, :, :]                           # mask non-edges / cross-graph
        z = jnp.sum(e, axis=-1, keepdims=True) + 1e-6              # [H, N, 1]
        o = jnp.einsum('hqk,hkd->hqd', e, v,
                       preferred_element_type=jnp.float32) / z     # exact normalization

        # head merge (head-major lane concat) fused into a single O projection
        o_cat = jnp.concatenate([o[hd] for hd in range(HEADS)], axis=-1)   # [N, HIDDEN]
        h_att = jnp.dot(o_cat.astype(jnp.bfloat16), wmat(f"wo{l}"),
                        preferred_element_type=jnp.float32) + cvec(f"bo{l}")

        # -- residual + LayerNorm 1
        h1 = h + h_att
        mu = jnp.mean(h1, axis=-1, keepdims=True)
        var = jnp.mean(jnp.square(h1 - mu), axis=-1, keepdims=True)
        h1 = (h1 - mu) * lax.rsqrt(var + LN_EPS) * cvec(f"ln1g{l}") + cvec(f"ln1b{l}")

        # -- FFN + residual + LayerNorm 2
        f = jnp.dot(h1.astype(jnp.bfloat16), wmat(f"w1{l}"),
                    preferred_element_type=jnp.float32) + cvec(f"b1{l}")
        f = jnp.maximum(f, 0.0)
        f = jnp.dot(f.astype(jnp.bfloat16), wmat(f"w2{l}"),
                    preferred_element_type=jnp.float32) + cvec(f"b2{l}")
        h2 = h1 + f
        mu2 = jnp.mean(h2, axis=-1, keepdims=True)
        var2 = jnp.mean(jnp.square(h2 - mu2), axis=-1, keepdims=True)
        h = (h2 - mu2) * lax.rsqrt(var2 + LN_EPS) * cvec(f"ln2g{l}") + cvec(f"ln2b{l}")

    # ---- readout: mean over nodes per graph (AdaptiveAvgPool1d(1)) + fc, one fused store
    pooled = jnp.concatenate(
        [jnp.mean(h[b * V:(b + 1) * V, :], axis=0, keepdims=True) for b in range(B)],
        axis=0)                                                     # [B, OUT_DIM]
    logits = jnp.dot(pooled.astype(jnp.bfloat16), wmat("fc_w"),
                     preferred_element_type=jnp.float32) + cvec("fc_b")
    out_ref[...] = jnp.concatenate([pooled, logits], axis=-1)       # [B, OUT_DIM + N_CLASSES]


# ---------------- parameter construction & packing (deterministic, host-side once) ----------------
def _linear(key, fan_in, fan_out, bias=True):
    kw, kb = jax.random.split(key)
    bound = 1.0 / math.sqrt(fan_in)
    w = jax.random.uniform(kw, (fan_in, fan_out), jnp.float32, -bound, bound)
    if bias:
        b = jax.random.uniform(kb, (1, fan_out), jnp.float32, -bound, bound)
        return w, b
    return w, None


def _positional_encoding_table():
    position = jnp.arange(MAX_SEQ, dtype=jnp.float32)[:, None]
    div_term = jnp.exp(jnp.arange(0, HIDDEN, 2, dtype=jnp.float32)
                       * (-math.log(10000.0) / HIDDEN))
    pe = jnp.zeros((MAX_SEQ, HIDDEN), jnp.float32)
    pe = pe.at[:, 0::2].set(jnp.sin(position * div_term))
    pe = pe.at[:, 1::2].set(jnp.cos(position * div_term))
    return pe.reshape(MAX_SEQ, 1, HIDDEN)   # matches pe.unsqueeze(0).transpose(0,1)


def make_params(key):
    keys = jax.random.split(key, 2 + 6 * N_LAYERS)
    ki = iter(keys)
    emb_w, emb_b = _linear(next(ki), IN_DIM, HIDDEN)

    scale = 1.0 / math.sqrt(HEAD_DIM)
    ones = jnp.ones((1, HIDDEN), jnp.float32)
    zeros = jnp.zeros((1, HIDDEN), jnp.float32)

    wmats = {"emb_w": emb_w}
    vvecs = {}
    for l in range(N_LAYERS):
        wq, _ = _linear(next(ki), HIDDEN, HIDDEN, bias=False)   # use_bias=False (canonical)
        wk, _ = _linear(next(ki), HIDDEN, HIDDEN, bias=False)
        wv, _ = _linear(next(ki), HIDDEN, HIDDEN, bias=False)
        wo, bo = _linear(next(ki), HIDDEN, HIDDEN)
        w1, b1 = _linear(next(ki), HIDDEN, FFN_DIM)
        w2, b2 = _linear(next(ki), FFN_DIM, HIDDEN)

        # fold 1/sqrt(head_dim) into Wq; pack Q/K/V into one [HIDDEN, 3*HIDDEN] matrix
        wmats[f"wqkv{l}"] = jnp.concatenate([wq * scale, wk, wv], axis=1)
        wmats[f"wo{l}"] = wo          # unsplit: concat(heads) @ Wo done as one matmul
        wmats[f"w1{l}"] = w1
        wmats[f"w2{l}"] = w2
        vvecs[f"bo{l}"] = bo
        vvecs[f"ln1g{l}"] = ones
        vvecs[f"ln1b{l}"] = zeros
        vvecs[f"b1{l}"] = b1
        vvecs[f"b2{l}"] = b2
        vvecs[f"ln2g{l}"] = ones
        vvecs[f"ln2b{l}"] = zeros

    fc_w, fc_b = _linear(next(ki), OUT_DIM, N_CLASSES)
    wmats["fc_w"] = fc_w
    vvecs["fc_b"] = fc_b

    # embedding bias + PE row per *batch index* broadcast over that graph's nodes
    # (spec semantics), folded into one constant additive term packed with the slab.
    pe_rows = _positional_encoding_table()[:B, 0, :]               # [B, HIDDEN]
    vvecs["bias_pe"] = emb_b + jnp.repeat(pe_rows, V, axis=0)      # [B*V, HIDDEN]

    return dict(
        w_slab=_pack_slab(W_LAYOUT, W_ROWS, wmats, jnp.bfloat16),  # one bf16 weight slab
        v_slab=_pack_slab(V_LAYOUT, V_ROWS, vvecs, jnp.float32),   # one f32 bias/LN/PE slab
    )


# ---------------- full forward (single fused pallas_call) ----------------
def graph_transformer_net_forward(batch_size, adj, h, params):
    """h: [B*V, IN_DIM] float node features; adj: [B, V, V] dense per-graph mask."""
    v = h.shape[0] // batch_size
    assert batch_size == B and v == V, "kernel is specialized for the module-level B, V"
    n = batch_size * v

    # block-diagonal adjacency over the flattened node axis (exact: masked exp => 0)
    eye = jnp.eye(batch_size, dtype=adj.dtype)
    adj_bd = (adj[:, None, :, :] * eye[:, :, None, None]) \
        .transpose(0, 2, 1, 3).reshape(n, n)

    # pack both per-call activations into one lane-contiguous operand -> 1 activation DMA
    xin = jnp.concatenate([h, adj_bd], axis=1)                     # [N, IN_DIM + N]

    # advisory cost estimate so XLA can schedule/overlap the tiny custom call
    flops = 2 * n * IN_DIM * HIDDEN + 2 * batch_size * OUT_DIM * N_CLASSES
    flops += N_LAYERS * (2 * n * HIDDEN * 3 * HIDDEN              # fused QKV
                         + 2 * HEADS * n * n * HEAD_DIM * 2       # scores + context
                         + 2 * n * HIDDEN * HIDDEN                # O projection
                         + 2 * n * HIDDEN * FFN_DIM * 2)          # FFN
    transcendentals = N_LAYERS * (HEADS * n * n + 2 * n)          # exp + rsqrt
    bytes_accessed = (xin.size * 4 + params["w_slab"].size * 2
                      + params["v_slab"].size * 4
                      + batch_size * (OUT_DIM + N_CLASSES) * 4)

    out = pl.pallas_call(
        fused_forward_kernel,
        out_shape=jax.ShapeDtypeStruct((batch_size, OUT_DIM + N_CLASSES), jnp.float32),
        # no grid: single invocation; 3 whole-array input DMAs + 1 output DMA,
        # everything (~170 KiB) resident in VMEM on v5e/v6e/v7x.
        in_specs=[pl.BlockSpec(memory_space=pltpu.MemorySpace.VMEM)] * 3,
        out_specs=pl.BlockSpec(memory_space=pltpu.MemorySpace.VMEM),
        cost_estimate=pl.CostEstimate(flops=int(flops),
                                      transcendentals=int(transcendentals),
                                      bytes_accessed=int(bytes_accessed)),
    )(xin, params["w_slab"], params["v_slab"])

    pooled = out[:, :OUT_DIM]
    logits = out[:, OUT_DIM:]
    return logits, pooled   # == (h_out, h) of the PyTorch forward


if __name__ == "__main__":
    key = jax.random.PRNGKey(0)
    kparams, kfeat = jax.random.split(key)
    params = make_params(kparams)
    h_nodes = jax.random.normal(kfeat, (B * V, IN_DIM), jnp.float32)
    adj = jnp.ones((B, V, V), jnp.float32)   # fully-connected graphs with self loops

    fwd = jax.jit(graph_transformer_net_forward, static_argnums=0)
    logits, pooled = fwd(B, adj, h_nodes, params)
    jax.block_until_ready((logits, pooled))

    assert logits.shape == (B, N_CLASSES) and pooled.shape == (B, OUT_DIM)
    assert bool(jnp.all(jnp.isfinite(logits))) and bool(jnp.all(jnp.isfinite(pooled)))
    print("KERNEL_OK")
</pallas_src>

<mosaic_0001>
module attributes {stable_mosaic.version = 11 : i64} {
  func.func @fused_forward_kernel(%arg0: memref<16x32xf32, #tpu.memory_space<vmem>>, %arg1: memref<368x128xbf16, #tpu.memory_space<vmem>>, %arg2: memref<136x128xf32, #tpu.memory_space<vmem>>, %arg3: memref<2x36xf32, #tpu.memory_space<vmem>>) attributes {dimension_semantics = [], scalar_prefetch = 0 : i64, scratch_operands = 0 : i64, tpu.core_type = #tpu.core_type<tc>} {
    %c0 = arith.constant 0 : index
    %c0_0 = arith.constant 0 : index
    %0 = vector.load %arg0[%c0, %c0_0] : memref<16x32xf32, #tpu.memory_space<vmem>>, vector<16x32xf32>
    %1 = vector.extract_strided_slice %0 {offsets = [0, 0], sizes = [16, 16], strides = [1, 1]} : vector<16x32xf32> to vector<16x16xf32>
    %2 = vector.extract_strided_slice %0 {offsets = [0, 16], sizes = [16, 16], strides = [1, 1]} : vector<16x32xf32> to vector<16x16xf32>
    %3 = arith.truncf %1 : vector<16x16xf32> to vector<16x16xbf16>
    %c0_1 = arith.constant 0 : index
    %c0_2 = arith.constant 0 : index
    %4 = vector.load %arg1[%c0_1, %c0_2] : memref<368x128xbf16, #tpu.memory_space<vmem>>, vector<16x32xbf16>
    %cst = arith.constant dense<0.000000e+00> : vector<16x32xf32>
    %5 = tpu.matmul %3, %4, %cst {dimension_numbers = #tpu.dot_dimension_numbers<[1], [0], [0], [1], [0, 0, 1, 1], [], []>} : vector<16x16xbf16>, vector<16x32xbf16>, vector<16x32xf32> -> vector<16x32xf32>
    %c0_3 = arith.constant 0 : index
    %c0_4 = arith.constant 0 : index
    %6 = vector.load %arg2[%c0_3, %c0_4] : memref<136x128xf32, #tpu.memory_space<vmem>>, vector<16x32xf32>
    %7 = arith.addf %5, %6 : vector<16x32xf32>
    %8 = arith.truncf %7 : vector<16x32xf32> to vector<16x32xbf16>
    %c16 = arith.constant 16 : index
    %c0_5 = arith.constant 0 : index
    %9 = vector.load %arg1[%c16, %c0_5] : memref<368x128xbf16, #tpu.memory_space<vmem>>, vector<32x96xbf16>
    %cst_6 = arith.constant dense<0.000000e+00> : vector<16x96xf32>
    %10 = tpu.matmul %8, %9, %cst_6 {dimension_numbers = #tpu.dot_dimension_numbers<[1], [0], [0], [1], [0, 0, 1, 1], [], []>} : vector<16x32xbf16>, vector<32x96xbf16>, vector<16x96xf32> -> vector<16x96xf32>
    %11 = vector.extract_strided_slice %10 {offsets = [0, 0], sizes = [16, 8], strides = [1, 1]} : vector<16x96xf32> to vector<16x8xf32>
    %12 = vector.extract_strided_slice %10 {offsets = [0, 8], sizes = [16, 8], strides = [1, 1]} : vector<16x96xf32> to vector<16x8xf32>
    %13 = vector.extract_strided_slice %10 {offsets = [0, 16], sizes = [16, 8], strides = [1, 1]} : vector<16x96xf32> to vector<16x8xf32>
    %14 = vector.extract_strided_slice %10 {offsets = [0, 24], sizes = [16, 8], strides = [1, 1]} : vector<16x96xf32> to vector<16x8xf32>
    %15 = vector.shape_cast %11 : vector<16x8xf32> to vector<1x16x8xf32>
    %16 = vector.shape_cast %12 : vector<16x8xf32> to vector<1x16x8xf32>
    %17 = vector.shape_cast %13 : vector<16x8xf32> to vector<1x16x8xf32>
    %18 = vector.shape_cast %14 : vector<16x8xf32> to vector<1x16x8xf32>
    %19 = tpu.concatenate %15, %16, %17, %18 in 0 : vector<1x16x8xf32>, vector<1x16x8xf32>, vector<1x16x8xf32>, vector<1x16x8xf32> -> vector<4x16x8xf32>
    %20 = vector.extract_strided_slice %10 {offsets = [0, 32], sizes = [16, 8], strides = [1, 1]} : vector<16x96xf32> to vector<16x8xf32>
    %21 = vector.extract_strided_slice %10 {offsets = [0, 40], sizes = [16, 8], strides = [1, 1]} : vector<16x96xf32> to vector<16x8xf32>
    %22 = vector.extract_strided_slice %10 {offsets = [0, 48], sizes = [16, 8], strides = [1, 1]} : vector<16x96xf32> to vector<16x8xf32>
    %23 = vector.extract_strided_slice %10 {offsets = [0, 56], sizes = [16, 8], strides = [1, 1]} : vector<16x96xf32> to vector<16x8xf32>
    %24 = vector.shape_cast %20 : vector<16x8xf32> to vector<1x16x8xf32>
    %25 = vector.shape_cast %21 : vector<16x8xf32> to vector<1x16x8xf32>
    %26 = vector.shape_cast %22 : vector<16x8xf32> to vector<1x16x8xf32>
    %27 = vector.shape_cast %23 : vector<16x8xf32> to vector<1x16x8xf32>
    %28 = tpu.concatenate %24, %25, %26, %27 in 0 : vector<1x16x8xf32>, vector<1x16x8xf32>, vector<1x16x8xf32>, vector<1x16x8xf32> -> vector<4x16x8xf32>
    %29 = vector.extract_strided_slice %10 {offsets = [0, 64], sizes = [16, 8], strides = [1, 1]} : vector<16x96xf32> to vector<16x8xf32>
    %30 = vector.extract_strided_slice %10 {offsets = [0, 72], sizes = [16, 8], strides = [1, 1]} : vector<16x96xf32> to vector<16x8xf32>
    %31 = vector.extract_strided_slice %10 {offsets = [0, 80], sizes = [16, 8], strides = [1, 1]} : vector<16x96xf32> to vector<16x8xf32>
    %32 = vector.extract_strided_slice %10 {offsets = [0, 88], sizes = [16, 8], strides = [1, 1]} : vector<16x96xf32> to vector<16x8xf32>
    %33 = vector.shape_cast %29 : vector<16x8xf32> to vector<1x16x8xf32>
    %34 = vector.shape_cast %30 : vector<16x8xf32> to vector<1x16x8xf32>
    %35 = vector.shape_cast %31 : vector<16x8xf32> to vector<1x16x8xf32>
    %36 = vector.shape_cast %32 : vector<16x8xf32> to vector<1x16x8xf32>
    %37 = tpu.concatenate %33, %34, %35, %36 in 0 : vector<1x16x8xf32>, vector<1x16x8xf32>, vector<1x16x8xf32>, vector<1x16x8xf32> -> vector<4x16x8xf32>
    "tpu.trace_start"() <{level = 10 : i32, message = "hqd,hkd->hqk"}> : () -> ()
    %cst_7 = arith.constant dense<0.000000e+00> : vector<4x16x16xf32>
    %38 = tpu.matmul %19, %28, %cst_7 {dimension_numbers = #tpu.dot_dimension_numbers<[2], [2], [1], [1], [0, 0, 0, 1, 1, 1], [0], [0]>} : vector<4x16x8xf32>, vector<4x16x8xf32>, vector<4x16x16xf32> -> vector<4x16x16xf32>
    %cst_8 = arith.constant -5.000000e+00 : f32
    %cst_9 = arith.constant 5.000000e+00 : f32
    "tpu.trace_stop"() : () -> ()
    %39 = vector.broadcast %cst_8 : f32 to vector<4x16x16xf32>
    %40 = arith.maximumf %39, %38 : vector<4x16x16xf32>
    %41 = vector.broadcast %cst_9 : f32 to vector<4x16x16xf32>
    %42 = arith.minimumf %41, %40 : vector<4x16x16xf32>
    %43 = math.exp %42 : vector<4x16x16xf32>
    %44 = vector.shape_cast %2 : vector<16x16xf32> to vector<1x16x16xf32>
    %45 = vector.broadcast %44 : vector<1x16x16xf32> to vector<4x16x16xf32>
    %46 = arith.mulf %43, %45 : vector<4x16x16xf32>
    %cst_10 = arith.constant dense<0.000000e+00> : vector<4x16xf32>
    %47 = vector.multi_reduction <add>, %46, %cst_10 [2] : vector<4x16x16xf32> to vector<4x16xf32>
    %48 = vector.shape_cast %47 : vector<4x16xf32> to vector<4x16x1xf32>
    %cst_11 = arith.constant 9.99999997E-7 : f32
    %49 = vector.broadcast %cst_11 : f32 to vector<4x16x1xf32>
    %50 = arith.addf %48, %49 : vector<4x16x1xf32>
    "tpu.trace_start"() <{level = 10 : i32, message = "hqk,hkd->hqd"}> : () -> ()
    %cst_12 = arith.constant dense<0.000000e+00> : vector<4x16x8xf32>
    %51 = tpu.matmul %46, %37, %cst_12 {dimension_numbers = #tpu.dot_dimension_numbers<[2], [1], [1], [2], [0, 0, 0, 1, 1, 2], [0], [0]>} : vector<4x16x16xf32>, vector<4x16x8xf32>, vector<4x16x8xf32> -> vector<4x16x8xf32>
    "tpu.trace_stop"() : () -> ()
    %52 = vector.broadcast %50 : vector<4x16x1xf32> to vector<4x16x8xf32>
    %53 = arith.divf %51, %52 : vector<4x16x8xf32>
    %54 = vector.extract_strided_slice %53 {offsets = [0, 0, 0], sizes = [1, 16, 8], strides = [1, 1, 1]} : vector<4x16x8xf32> to vector<1x16x8xf32>
    %55 = vector.shape_cast %54 : vector<1x16x8xf32> to vector<16x8xf32>
    %56 = vector.extract_strided_slice %53 {offsets = [1, 0, 0], sizes = [1, 16, 8], strides = [1, 1, 1]} : vector<4x16x8xf32> to vector<1x16x8xf32>
    %57 = vector.shape_cast %56 : vector<1x16x8xf32> to vector<16x8xf32>
    %58 = vector.extract_strided_slice %53 {offsets = [2, 0, 0], sizes = [1, 16, 8], strides = [1, 1, 1]} : vector<4x16x8xf32> to vector<1x16x8xf32>
    %59 = vector.shape_cast %58 : vector<1x16x8xf32> to vector<16x8xf32>
    %60 = vector.extract_strided_slice %53 {offsets = [3, 0, 0], sizes = [1, 16, 8], strides = [1, 1, 1]} : vector<4x16x8xf32> to vector<1x16x8xf32>
    %61 = vector.shape_cast %60 : vector<1x16x8xf32> to vector<16x8xf32>
    %62 = tpu.concatenate %55, %57, %59, %61 in 1 : vector<16x8xf32>, vector<16x8xf32>, vector<16x8xf32>, vector<16x8xf32> -> vector<16x32xf32>
    %63 = arith.truncf %62 : vector<16x32xf32> to vector<16x32xbf16>
    %c48 = arith.constant 48 : index
    %c0_13 = arith.constant 0 : index
    %64 = vector.load %arg1[%c48, %c0_13] : memref<368x128xbf16, #tpu.memory_space<vmem>>, vector<32x32xbf16>
    %cst_14 = arith.constant dense<0.000000e+00> : vector<16x32xf32>
    %65 = tpu.matmul %63, %64, %cst_14 {dimension_numbers = #tpu.dot_dimension_numbers<[1], [0], [0], [1], [0, 0, 1, 1], [], []>} : vector<16x32xbf16>, vector<32x32xbf16>, vector<16x32xf32> -> vector<16x32xf32>
    %c16_15 = arith.constant 16 : index
    %c0_16 = arith.constant 0 : index
    %66 = vector.load %arg2[%c16_15, %c0_16] : memref<136x128xf32, #tpu.memory_space<vmem>>, vector<1x32xf32>
    %67 = vector.broadcast %66 : vector<1x32xf32> to vector<16x32xf32>
    %68 = arith.addf %65, %67 : vector<16x32xf32>
    %69 = arith.addf %7, %68 : vector<16x32xf32>
    %cst_17 = arith.constant dense<0.000000e+00> : vector<16xf32>
    %70 = vector.multi_reduction <add>, %69, %cst_17 [1] : vector<16x32xf32> to vector<16xf32>
    %71 = vector.shape_cast %70 : vector<16xf32> to vector<16x1xf32>
    %cst_18 = arith.constant 3.200000e+01 : f32
    %72 = vector.broadcast %cst_18 : f32 to vector<16x1xf32>
    %73 = arith.divf %71, %72 : vector<16x1xf32>
    %74 = vector.broadcast %73 : vector<16x1xf32> to vector<16x32xf32>
    %75 = arith.subf %69, %74 : vector<16x32xf32>
    %76 = arith.mulf %75, %75 : vector<16x32xf32>
    %cst_19 = arith.constant dense<0.000000e+00> : vector<16xf32>
    %77 = vector.multi_reduction <add>, %76, %cst_19 [1] : vector<16x32xf32> to vector<16xf32>
    %78 = vector.shape_cast %77 : vector<16xf32> to vector<16x1xf32>
    %cst_20 = arith.constant 3.200000e+01 : f32
    %79 = vector.broadcast %cst_20 : f32 to vector<16x1xf32>
    %80 = arith.divf %78, %79 : vector<16x1xf32>
    %81 = vector.broadcast %73 : vector<16x1xf32> to vector<16x32xf32>
    %82 = arith.subf %69, %81 : vector<16x32xf32>
    %cst_21 = arith.constant 9.99999974E-6 : f32
    %83 = vector.broadcast %cst_21 : f32 to vector<16x1xf32>
    %84 = arith.addf %80, %83 : vector<16x1xf32>
    %85 = math.rsqrt %84 : vector<16x1xf32>
    %86 = vector.broadcast %85 : vector<16x1xf32> to vector<16x32xf32>
    %87 = arith.mulf %82, %86 : vector<16x32xf32>
    %c24 = arith.constant 24 : index
    %c0_22 = arith.constant 0 : index
    %88 = vector.load %arg2[%c24, %c0_22] : memref<136x128xf32, #tpu.memory_space<vmem>>, vector<1x32xf32>
    %89 = vector.broadcast %88 : vector<1x32xf32> to vector<16x32xf32>
    %90 = arith.mulf %87, %89 : vector<16x32xf32>
    %c32 = arith.constant 32 : index
    %c0_23 = arith.constant 0 : index
    %91 = vector.load %arg2[%c32, %c0_23] : memref<136x128xf32, #tpu.memory_space<vmem>>, vector<1x32xf32>
    %92 = vector.broadcast %91 : vector<1x32xf32> to vector<16x32xf32>
    %93 = arith.addf %90, %92 : vector<16x32xf32>
    %94 = arith.truncf %93 : vector<16x32xf32> to vector<16x32xbf16>
    %c80 = arith.constant 80 : index
    %c0_24 = arith.constant 0 : index
    %95 = vector.load %arg1[%c80, %c0_24] : memref<368x128xbf16, #tpu.memory_space<vmem>>, vector<32x64xbf16>
    %cst_25 = arith.constant dense<0.000000e+00> : vector<16x64xf32>
    %96 = tpu.matmul %94, %95, %cst_25 {dimension_numbers = #tpu.dot_dimension_numbers<[1], [0], [0], [1], [0, 0, 1, 1], [], []>} : vector<16x32xbf16>, vector<32x64xbf16>, vector<16x64xf32> -> vector<16x64xf32>
    %c40 = arith.constant 40 : index
    %c0_26 = arith.constant 0 : index
    %97 = vector.load %arg2[%c40, %c0_26] : memref<136x128xf32, #tpu.memory_space<vmem>>, vector<1x64xf32>
    %98 = vector.broadcast %97 : vector<1x64xf32> to vector<16x64xf32>
    %99 = arith.addf %96, %98 : vector<16x64xf32>
    %cst_27 = arith.constant 0.000000e+00 : f32
    %100 = vector.broadcast %cst_27 : f32 to vector<16x64xf32>
    %101 = arith.maximumf %99, %100 : vector<16x64xf32>
    %102 = arith.truncf %101 : vector<16x64xf32> to vector<16x64xbf16>
    %c112 = arith.constant 112 : index
    %c0_28 = arith.constant 0 : index
    %103 = vector.load %arg1[%c112, %c0_28] : memref<368x128xbf16, #tpu.memory_space<vmem>>, vector<64x32xbf16>
    %cst_29 = arith.constant dense<0.000000e+00> : vector<16x32xf32>
    %104 = tpu.matmul %102, %103, %cst_29 {dimension_numbers = #tpu.dot_dimension_numbers<[1], [0], [0], [1], [0, 0, 1, 1], [], []>} : vector<16x64xbf16>, vector<64x32xbf16>, vector<16x32xf32> -> vector<16x32xf32>
    %c48_30 = arith.constant 48 : index
    %c0_31 = arith.constant 0 : index
    %105 = vector.load %arg2[%c48_30, %c0_31] : memref<136x128xf32, #tpu.memory_space<vmem>>, vector<1x32xf32>
    %106 = vector.broadcast %105 : vector<1x32xf32> to vector<16x32xf32>
    %107 = arith.addf %104, %106 : vector<16x32xf32>
    %108 = arith.addf %93, %107 : vector<16x32xf32>
    %cst_32 = arith.constant dense<0.000000e+00> : vector<16xf32>
    %109 = vector.multi_reduction <add>, %108, %cst_32 [1] : vector<16x32xf32> to vector<16xf32>
    %110 = vector.shape_cast %109 : vector<16xf32> to vector<16x1xf32>
    %cst_33 = arith.constant 3.200000e+01 : f32
    %111 = vector.broadcast %cst_33 : f32 to vector<16x1xf32>
    %112 = arith.divf %110, %111 : vector<16x1xf32>
    %113 = vector.broadcast %112 : vector<16x1xf32> to vector<16x32xf32>
    %114 = arith.subf %108, %113 : vector<16x32xf32>
    %115 = arith.mulf %114, %114 : vector<16x32xf32>
    %cst_34 = arith.constant dense<0.000000e+00> : vector<16xf32>
    %116 = vector.multi_reduction <add>, %115, %cst_34 [1] : vector<16x32xf32> to vector<16xf32>
    %117 = vector.shape_cast %116 : vector<16xf32> to vector<16x1xf32>
    %cst_35 = arith.constant 3.200000e+01 : f32
    %118 = vector.broadcast %cst_35 : f32 to vector<16x1xf32>
    %119 = arith.divf %117, %118 : vector<16x1xf32>
    %120 = vector.broadcast %112 : vector<16x1xf32> to vector<16x32xf32>
    %121 = arith.subf %108, %120 : vector<16x32xf32>
    %cst_36 = arith.constant 9.99999974E-6 : f32
    %122 = vector.broadcast %cst_36 : f32 to vector<16x1xf32>
    %123 = arith.addf %119, %122 : vector<16x1xf32>
    %124 = math.rsqrt %123 : vector<16x1xf32>
    %125 = vector.broadcast %124 : vector<16x1xf32> to vector<16x32xf32>
    %126 = arith.mulf %121, %125 : vector<16x32xf32>
    %c56 = arith.constant 56 : index
    %c0_37 = arith.constant 0 : index
    %127 = vector.load %arg2[%c56, %c0_37] : memref<136x128xf32, #tpu.memory_space<vmem>>, vector<1x32xf32>
    %128 = vector.broadcast %127 : vector<1x32xf32> to vector<16x32xf32>
    %129 = arith.mulf %126, %128 : vector<16x32xf32>
    %c64 = arith.constant 64 : index
    %c0_38 = arith.constant 0 : index
    %130 = vector.load %arg2[%c64, %c0_38] : memref<136x128xf32, #tpu.memory_space<vmem>>, vector<1x32xf32>
    %131 = vector.broadcast %130 : vector<1x32xf32> to vector<16x32xf32>
    %132 = arith.addf %129, %131 : vector<16x32xf32>
    %133 = arith.truncf %132 : vector<16x32xf32> to vector<16x32xbf16>
    %c176 = arith.constant 176 : index
    %c0_39 = arith.constant 0 : index
    %134 = vector.load %arg1[%c176, %c0_39] : memref<368x128xbf16, #tpu.memory_space<vmem>>, vector<32x96xbf16>
    %cst_40 = arith.constant dense<0.000000e+00> : vector<16x96xf32>
    %135 = tpu.matmul %133, %134, %cst_40 {dimension_numbers = #tpu.dot_dimension_numbers<[1], [0], [0], [1], [0, 0, 1, 1], [], []>} : vector<16x32xbf16>, vector<32x96xbf16>, vector<16x96xf32> -> vector<16x96xf32>
    %136 = vector.extract_strided_slice %135 {offsets = [0, 0], sizes = [16, 8], strides = [1, 1]} : vector<16x96xf32> to vector<16x8xf32>
    %137 = vector.extract_strided_slice %135 {offsets = [0, 8], sizes = [16, 8], strides = [1, 1]} : vector<16x96xf32> to vector<16x8xf32>
    %138 = vector.extract_strided_slice %135 {offsets = [0, 16], sizes = [16, 8], strides = [1, 1]} : vector<16x96xf32> to vector<16x8xf32>
    %139 = vector.extract_strided_slice %135 {offsets = [0, 24], sizes = [16, 8], strides = [1, 1]} : vector<16x96xf32> to vector<16x8xf32>
    %140 = vector.shape_cast %136 : vector<16x8xf32> to vector<1x16x8xf32>
    %141 = vector.shape_cast %137 : vector<16x8xf32> to vector<1x16x8xf32>
    %142 = vector.shape_cast %138 : vector<16x8xf32> to vector<1x16x8xf32>
    %143 = vector.shape_cast %139 : vector<16x8xf32> to vector<1x16x8xf32>
    %144 = tpu.concatenate %140, %141, %142, %143 in 0 : vector<1x16x8xf32>, vector<1x16x8xf32>, vector<1x16x8xf32>, vector<1x16x8xf32> -> vector<4x16x8xf32>
    %145 = vector.extract_strided_slice %135 {offsets = [0, 32], sizes = [16, 8], strides = [1, 1]} : vector<16x96xf32> to vector<16x8xf32>
    %146 = vector.extract_strided_slice %135 {offsets = [0, 40], sizes = [16, 8], strides = [1, 1]} : vector<16x96xf32> to vector<16x8xf32>
    %147 = vector.extract_strided_slice %135 {offsets = [0, 48], sizes = [16, 8], strides = [1, 1]} : vector<16x96xf32> to vector<16x8xf32>
    %148 = vector.extract_strided_slice %135 {offsets = [0, 56], sizes = [16, 8], strides = [1, 1]} : vector<16x96xf32> to vector<16x8xf32>
    %149 = vector.shape_cast %145 : vector<16x8xf32> to vector<1x16x8xf32>
    %150 = vector.shape_cast %146 : vector<16x8xf32> to vector<1x16x8xf32>
    %151 = vector.shape_cast %147 : vector<16x8xf32> to vector<1x16x8xf32>
    %152 = vector.shape_cast %148 : vector<16x8xf32> to vector<1x16x8xf32>
    %153 = tpu.concatenate %149, %150, %151, %152 in 0 : vector<1x16x8xf32>, vector<1x16x8xf32>, vector<1x16x8xf32>, vector<1x16x8xf32> -> vector<4x16x8xf32>
    %154 = vector.extract_strided_slice %135 {offsets = [0, 64], sizes = [16, 8], strides = [1, 1]} : vector<16x96xf32> to vector<16x8xf32>
    %155 = vector.extract_strided_slice %135 {offsets = [0, 72], sizes = [16, 8], strides = [1, 1]} : vector<16x96xf32> to vector<16x8xf32>
    %156 = vector.extract_strided_slice %135 {offsets = [0, 80], sizes = [16, 8], strides = [1, 1]} : vector<16x96xf32> to vector<16x8xf32>
    %157 = vector.extract_strided_slice %135 {offsets = [0, 88], sizes = [16, 8], strides = [1, 1]} : vector<16x96xf32> to vector<16x8xf32>
    %158 = vector.shape_cast %154 : vector<16x8xf32> to vector<1x16x8xf32>
    %159 = vector.shape_cast %155 : vector<16x8xf32> to vector<1x16x8xf32>
    %160 = vector.shape_cast %156 : vector<16x8xf32> to vector<1x16x8xf32>
    %161 = vector.shape_cast %157 : vector<16x8xf32> to vector<1x16x8xf32>
    %162 = tpu.concatenate %158, %159, %160, %161 in 0 : vector<1x16x8xf32>, vector<1x16x8xf32>, vector<1x16x8xf32>, vector<1x16x8xf32> -> vector<4x16x8xf32>
    "tpu.trace_start"() <{level = 10 : i32, message = "hqd,hkd->hqk"}> : () -> ()
    %cst_41 = arith.constant dense<0.000000e+00> : vector<4x16x16xf32>
    %163 = tpu.matmul %144, %153, %cst_41 {dimension_numbers = #tpu.dot_dimension_numbers<[2], [2], [1], [1], [0, 0, 0, 1, 1, 1], [0], [0]>} : vector<4x16x8xf32>, vector<4x16x8xf32>, vector<4x16x16xf32> -> vector<4x16x16xf32>
    %cst_42 = arith.constant -5.000000e+00 : f32
    %cst_43 = arith.constant 5.000000e+00 : f32
    "tpu.trace_stop"() : () -> ()
    %164 = vector.broadcast %cst_42 : f32 to vector<4x16x16xf32>
    %165 = arith.maximumf %164, %163 : vector<4x16x16xf32>
    %166 = vector.broadcast %cst_43 : f32 to vector<4x16x16xf32>
    %167 = arith.minimumf %166, %165 : vector<4x16x16xf32>
    %168 = math.exp %167 : vector<4x16x16xf32>
    %169 = vector.shape_cast %2 : vector<16x16xf32> to vector<1x16x16xf32>
    %170 = vector.broadcast %169 : vector<1x16x16xf32> to vector<4x16x16xf32>
    %171 = arith.mulf %168, %170 : vector<4x16x16xf32>
    %cst_44 = arith.constant dense<0.000000e+00> : vector<4x16xf32>
    %172 = vector.multi_reduction <add>, %171, %cst_44 [2] : vector<4x16x16xf32> to vector<4x16xf32>
    %173 = vector.shape_cast %172 : vector<4x16xf32> to vector<4x16x1xf32>
    %cst_45 = arith.constant 9.99999997E-7 : f32
    %174 = vector.broadcast %cst_45 : f32 to vector<4x16x1xf32>
    %175 = arith.addf %173, %174 : vector<4x16x1xf32>
    "tpu.trace_start"() <{level = 10 : i32, message = "hqk,hkd->hqd"}> : () -> ()
    %cst_46 = arith.constant dense<0.000000e+00> : vector<4x16x8xf32>
    %176 = tpu.matmul %171, %162, %cst_46 {dimension_numbers = #tpu.dot_dimension_numbers<[2], [1], [1], [2], [0, 0, 0, 1, 1, 2], [0], [0]>} : vector<4x16x16xf32>, vector<4x16x8xf32>, vector<4x16x8xf32> -> vector<4x16x8xf32>
    "tpu.trace_stop"() : () -> ()
    %177 = vector.broadcast %175 : vector<4x16x1xf32> to vector<4x16x8xf32>
    %178 = arith.divf %176, %177 : vector<4x16x8xf32>
    %179 = vector.extract_strided_slice %178 {offsets = [0, 0, 0], sizes = [1, 16, 8], strides = [1, 1, 1]} : vector<4x16x8xf32> to vector<1x16x8xf32>
    %180 = vector.shape_cast %179 : vector<1x16x8xf32> to vector<16x8xf32>
    %181 = vector.extract_strided_slice %178 {offsets = [1, 0, 0], sizes = [1, 16, 8], strides = [1, 1, 1]} : vector<4x16x8xf32> to vector<1x16x8xf32>
    %182 = vector.shape_cast %181 : vector<1x16x8xf32> to vector<16x8xf32>
    %183 = vector.extract_strided_slice %178 {offsets = [2, 0, 0], sizes = [1, 16, 8], strides = [1, 1, 1]} : vector<4x16x8xf32> to vector<1x16x8xf32>
    %184 = vector.shape_cast %183 : vector<1x16x8xf32> to vector<16x8xf32>
    %185 = vector.extract_strided_slice %178 {offsets = [3, 0, 0], sizes = [1, 16, 8], strides = [1, 1, 1]} : vector<4x16x8xf32> to vector<1x16x8xf32>
    %186 = vector.shape_cast %185 : vector<1x16x8xf32> to vector<16x8xf32>
    %187 = tpu.concatenate %180, %182, %184, %186 in 1 : vector<16x8xf32>, vector<16x8xf32>, vector<16x8xf32>, vector<16x8xf32> -> vector<16x32xf32>
    %188 = arith.truncf %187 : vector<16x32xf32> to vector<16x32xbf16>
    %c208 = arith.constant 208 : index
    %c0_47 = arith.constant 0 : index
    %189 = vector.load %arg1[%c208, %c0_47] : memref<368x128xbf16, #tpu.memory_space<vmem>>, vector<32x32xbf16>
    %cst_48 = arith.constant dense<0.000000e+00> : vector<16x32xf32>
    %190 = tpu.matmul %188, %189, %cst_48 {dimension_numbers = #tpu.dot_dimension_numbers<[1], [0], [0], [1], [0, 0, 1, 1], [], []>} : vector<16x32xbf16>, vector<32x32xbf16>, vector<16x32xf32> -> vector<16x32xf32>
    %c72 = arith.constant 72 : index
    %c0_49 = arith.constant 0 : index
    %191 = vector.load %arg2[%c72, %c0_49] : memref<136x128xf32, #tpu.memory_space<vmem>>, vector<1x32xf32>
    %192 = vector.broadcast %191 : vector<1x32xf32> to vector<16x32xf32>
    %193 = arith.addf %190, %192 : vector<16x32xf32>
    %194 = arith.addf %132, %193 : vector<16x32xf32>
    %cst_50 = arith.constant dense<0.000000e+00> : vector<16xf32>
    %195 = vector.multi_reduction <add>, %194, %cst_50 [1] : vector<16x32xf32> to vector<16xf32>
    %196 = vector.shape_cast %195 : vector<16xf32> to vector<16x1xf32>
    %cst_51 = arith.constant 3.200000e+01 : f32
    %197 = vector.broadcast %cst_51 : f32 to vector<16x1xf32>
    %198 = arith.divf %196, %197 : vector<16x1xf32>
    %199 = vector.broadcast %198 : vector<16x1xf32> to vector<16x32xf32>
    %200 = arith.subf %194, %199 : vector<16x32xf32>
    %201 = arith.mulf %200, %200 : vector<16x32xf32>
    %cst_52 = arith.constant dense<0.000000e+00> : vector<16xf32>
    %202 = vector.multi_reduction <add>, %201, %cst_52 [1] : vector<16x32xf32> to vector<16xf32>
    %203 = vector.shape_cast %202 : vector<16xf32> to vector<16x1xf32>
    %cst_53 = arith.constant 3.200000e+01 : f32
    %204 = vector.broadcast %cst_53 : f32 to vector<16x1xf32>
    %205 = arith.divf %203, %204 : vector<16x1xf32>
    %206 = vector.broadcast %198 : vector<16x1xf32> to vector<16x32xf32>
    %207 = arith.subf %194, %206 : vector<16x32xf32>
    %cst_54 = arith.constant 9.99999974E-6 : f32
    %208 = vector.broadcast %cst_54 : f32 to vector<16x1xf32>
    %209 = arith.addf %205, %208 : vector<16x1xf32>
    %210 = math.rsqrt %209 : vector<16x1xf32>
    %211 = vector.broadcast %210 : vector<16x1xf32> to vector<16x32xf32>
    %212 = arith.mulf %207, %211 : vector<16x32xf32>
    %c80_55 = arith.constant 80 : index
    %c0_56 = arith.constant 0 : index
    %213 = vector.load %arg2[%c80_55, %c0_56] : memref<136x128xf32, #tpu.memory_space<vmem>>, vector<1x32xf32>
    %214 = vector.broadcast %213 : vector<1x32xf32> to vector<16x32xf32>
    %215 = arith.mulf %212, %214 : vector<16x32xf32>
    %c88 = arith.constant 88 : index
    %c0_57 = arith.constant 0 : index
    %216 = vector.load %arg2[%c88, %c0_57] : memref<136x128xf32, #tpu.memory_space<vmem>>, vector<1x32xf32>
    %217 = vector.broadcast %216 : vector<1x32xf32> to vector<16x32xf32>
    %218 = arith.addf %215, %217 : vector<16x32xf32>
    %219 = arith.truncf %218 : vector<16x32xf32> to vector<16x32xbf16>
    %c240 = arith.constant 240 : index
    %c0_58 = arith.constant 0 : index
    %220 = vector.load %arg1[%c240, %c0_58] : memref<368x128xbf16, #tpu.memory_space<vmem>>, vector<32x64xbf16>
    %cst_59 = arith.constant dense<0.000000e+00> : vector<16x64xf32>
    %221 = tpu.matmul %219, %220, %cst_59 {dimension_numbers = #tpu.dot_dimension_numbers<[1], [0], [0], [1], [0, 0, 1, 1], [], []>} : vector<16x32xbf16>, vector<32x64xbf16>, vector<16x64xf32> -> vector<16x64xf32>
    %c96 = arith.constant 96 : index
    %c0_60 = arith.constant 0 : index
    %222 = vector.load %arg2[%c96, %c0_60] : memref<136x128xf32, #tpu.memory_space<vmem>>, vector<1x64xf32>
    %223 = vector.broadcast %222 : vector<1x64xf32> to vector<16x64xf32>
    %224 = arith.addf %221, %223 : vector<16x64xf32>
    %cst_61 = arith.constant 0.000000e+00 : f32
    %225 = vector.broadcast %cst_61 : f32 to vector<16x64xf32>
    %226 = arith.maximumf %224, %225 : vector<16x64xf32>
    %227 = arith.truncf %226 : vector<16x64xf32> to vector<16x64xbf16>
    %c272 = arith.constant 272 : index
    %c0_62 = arith.constant 0 : index
    %228 = vector.load %arg1[%c272, %c0_62] : memref<368x128xbf16, #tpu.memory_space<vmem>>, vector<64x32xbf16>
    %cst_63 = arith.constant dense<0.000000e+00> : vector<16x32xf32>
    %229 = tpu.matmul %227, %228, %cst_63 {dimension_numbers = #tpu.dot_dimension_numbers<[1], [0], [0], [1], [0, 0, 1, 1], [], []>} : vector<16x64xbf16>, vector<64x32xbf16>, vector<16x32xf32> -> vector<16x32xf32>
    %c104 = arith.constant 104 : index
    %c0_64 = arith.constant 0 : index
    %230 = vector.load %arg2[%c104, %c0_64] : memref<136x128xf32, #tpu.memory_space<vmem>>, vector<1x32xf32>
    %231 = vector.broadcast %230 : vector<1x32xf32> to vector<16x32xf32>
    %232 = arith.addf %229, %231 : vector<16x32xf32>
    %233 = arith.addf %218, %232 : vector<16x32xf32>
    %cst_65 = arith.constant dense<0.000000e+00> : vector<16xf32>
    %234 = vector.multi_reduction <add>, %233, %cst_65 [1] : vector<16x32xf32> to vector<16xf32>
    %235 = vector.shape_cast %234 : vector<16xf32> to vector<16x1xf32>
    %cst_66 = arith.constant 3.200000e+01 : f32
    %236 = vector.broadcast %cst_66 : f32 to vector<16x1xf32>
    %237 = arith.divf %235, %236 : vector<16x1xf32>
    %238 = vector.broadcast %237 : vector<16x1xf32> to vector<16x32xf32>
    %239 = arith.subf %233, %238 : vector<16x32xf32>
    %240 = arith.mulf %239, %239 : vector<16x32xf32>
    %cst_67 = arith.constant dense<0.000000e+00> : vector<16xf32>
    %241 = vector.multi_reduction <add>, %240, %cst_67 [1] : vector<16x32xf32> to vector<16xf32>
    %242 = vector.shape_cast %241 : vector<16xf32> to vector<16x1xf32>
    %cst_68 = arith.constant 3.200000e+01 : f32
    %243 = vector.broadcast %cst_68 : f32 to vector<16x1xf32>
    %244 = arith.divf %242, %243 : vector<16x1xf32>
    %245 = vector.broadcast %237 : vector<16x1xf32> to vector<16x32xf32>
    %246 = arith.subf %233, %245 : vector<16x32xf32>
    %cst_69 = arith.constant 9.99999974E-6 : f32
    %247 = vector.broadcast %cst_69 : f32 to vector<16x1xf32>
    %248 = arith.addf %244, %247 : vector<16x1xf32>
    %249 = math.rsqrt %248 : vector<16x1xf32>
    %250 = vector.broadcast %249 : vector<16x1xf32> to vector<16x32xf32>
    %251 = arith.mulf %246, %250 : vector<16x32xf32>
    %c112_70 = arith.constant 112 : index
    %c0_71 = arith.constant 0 : index
    %252 = vector.load %arg2[%c112_70, %c0_71] : memref<136x128xf32, #tpu.memory_space<vmem>>, vector<1x32xf32>
    %253 = vector.broadcast %252 : vector<1x32xf32> to vector<16x32xf32>
    %254 = arith.mulf %251, %253 : vector<16x32xf32>
    %c120 = arith.constant 120 : index
    %c0_72 = arith.constant 0 : index
    %255 = vector.load %arg2[%c120, %c0_72] : memref<136x128xf32, #tpu.memory_space<vmem>>, vector<1x32xf32>
    %256 = vector.broadcast %255 : vector<1x32xf32> to vector<16x32xf32>
    %257 = arith.addf %254, %256 : vector<16x32xf32>
    %258 = vector.extract_strided_slice %257 {offsets = [0, 0], sizes = [8, 32], strides = [1, 1]} : vector<16x32xf32> to vector<8x32xf32>
    %cst_73 = arith.constant dense<0.000000e+00> : vector<32xf32>
    %259 = vector.multi_reduction <add>, %258, %cst_73 [0] : vector<8x32xf32> to vector<32xf32>
    %260 = vector.shape_cast %259 : vector<32xf32> to vector<1x32xf32>
    %cst_74 = arith.constant 8.000000e+00 : f32
    %261 = vector.broadcast %cst_74 : f32 to vector<1x32xf32>
    %262 = arith.divf %260, %261 : vector<1x32xf32>
    %263 = vector.extract_strided_slice %257 {offsets = [8, 0], sizes = [8, 32], strides = [1, 1]} : vector<16x32xf32> to vector<8x32xf32>
    %cst_75 = arith.constant dense<0.000000e+00> : vector<32xf32>
    %264 = vector.multi_reduction <add>, %263, %cst_75 [0] : vector<8x32xf32> to vector<32xf32>
    %265 = vector.shape_cast %264 : vector<32xf32> to vector<1x32xf32>
    %cst_76 = arith.constant 8.000000e+00 : f32
    %266 = vector.broadcast %cst_76 : f32 to vector<1x32xf32>
    %267 = arith.divf %265, %266 : vector<1x32xf32>
    %268 = tpu.concatenate %262, %267 in 0 : vector<1x32xf32>, vector<1x32xf32> -> vector<2x32xf32>
    %269 = arith.truncf %268 : vector<2x32xf32> to vector<2x32xbf16>
    %c336 = arith.constant 336 : index
    %c0_77 = arith.constant 0 : index
    %270 = vector.load %arg1[%c336, %c0_77] : memref<368x128xbf16, #tpu.memory_space<vmem>>, vector<32x4xbf16>
    %cst_78 = arith.constant dense<0.000000e+00> : vector<2x4xf32>
    %271 = tpu.matmul %269, %270, %cst_78 {dimension_numbers = #tpu.dot_dimension_numbers<[1], [0], [0], [1], [0, 0, 1, 1], [], []>} : vector<2x32xbf16>, vector<32x4xbf16>, vector<2x4xf32> -> vector<2x4xf32>
    %c128 = arith.constant 128 : index
    %c0_79 = arith.constant 0 : index
    %272 = vector.load %arg2[%c128, %c0_79] : memref<136x128xf32, #tpu.memory_space<vmem>>, vector<1x4xf32>
    %273 = vector.broadcast %272 : vector<1x4xf32> to vector<2x4xf32>
    %274 = arith.addf %271, %273 : vector<2x4xf32>
    %275 = tpu.concatenate %268, %274 in 1 : vector<2x32xf32>, vector<2x4xf32> -> vector<2x36xf32>
    %c0_80 = arith.constant 0 : index
    %c0_81 = arith.constant 0 : index
    %276 = vector.load %arg3[%c0_80, %c0_81] : memref<2x36xf32, #tpu.memory_space<vmem>>, vector<2x36xf32>
    tpu.vector_store %arg3[%c0_80, %c0_81], %275 {strides = array<i32>} : memref<2x36xf32, #tpu.memory_space<vmem>>, vector<2x36xf32>,
    return
  }
}

</mosaic_0001>

<llo_original>
// kernel: graph_transformer_net_forward.1
$region0: #{graph_transformer_net_forward.1}
  #allocation0 [shape = 'u32[]', space=smem, size = 0x4, offset = 0x4, fixed_abs, tag = 'smem constant byte address 0x4 - core index']
  #allocation1 [shape = 'u32[144,128]{1,0:T(1,128)}', space=vmem, size = 0x12000, scoped, tag = 'internal scratch']
  %s0 = inlined_call_operand.vmem [shape: f32[16,32], index: 0, kind: input, shape index: {}]
  %s1 = inlined_call_operand.hbm [shape: bf16[368,128], index: 1, kind: input, shape index: {}]
  %s2 = inlined_call_operand.vmem [shape: f32[136,128], index: 2, kind: input, shape index: {}]
  %s3 = inlined_call_operand.vmem [shape: f32[2,36], index: 3, kind: output, shape index: {}]
  %s4 = sld [smem:[#allocation0]]
  $region26: #{graph_transformer_net_forward.1} parent=0
    _
  %s6 = ssub.s32 1, %s4
  %s7 = scalar_select 0, %s6, %s4
  $region1: #{graph_transformer_net_forward.1} parent=0
    #allocation2 [shape = 'u8[94208]{0}', space=vmem, size = 0x17000, scoped, tag = 'input window, operand 1, single buffered']
    #allocation3 [shape = 's32[1]{0}', space=sflag, size = 0x4, scoped, tag = 'scoped memory for graph_transformer_net_forward.1']
    %8 = vsyncpa [#allocation3], 0
    // Predicated region
    $region2: #{graph_transformer_net_forward.1} parent=1 // pred_check
      _
    $region3: #{graph_transformer_net_forward.1} parent=1 // pred_check_branch
      %10 = sbr.rel (0) target = $region5
    $region4: #{graph_transformer_net_forward.1} parent=1 // pred_region
      _
    $region5: #{graph_transformer_net_forward.1} parent=1 // pred_fallthru
      _
    // Predicated region
    $region6: #{graph_transformer_net_forward.1} parent=1 // pred_check
      _
    $region7: #{graph_transformer_net_forward.1} parent=1 // pred_check_branch
      %12 = sbr.rel (0) target = $region9
    $region8: #{graph_transformer_net_forward.1} parent=1 // pred_region
      %s14 = ssub.s32 2944, 2944
      %15 = vsyncadd [#allocation3], %s14
      %s16 = sshll.u32 [#allocation2], 4
      %s17 = int_to_ptr.vmem [resolvable:$true] %s16
      %22 = dma.hbm_to_vmem [thread:$0]  %s1, 2944, %s17, [#allocation3], 64, 64, 4
    $region9: #{graph_transformer_net_forward.1} parent=1 // pred_fallthru
      _
    // Predicated region
    $region10: #{graph_transformer_net_forward.1} parent=1 // pred_check
      _
    $region11: #{graph_transformer_net_forward.1} parent=1 // pred_check_branch
      %24 = sbr.rel (0) target = $region13
    $region12: #{graph_transformer_net_forward.1} parent=1 // pred_region
      _
    $region13: #{graph_transformer_net_forward.1} parent=1 // pred_fallthru
      _
    // Predicated region
    $region14: #{graph_transformer_net_forward.1} parent=1 // pred_check
      _
    $region15: #{graph_transformer_net_forward.1} parent=1 // pred_check_branch
      %26 = sbr.rel (0) target = $region17
    $region16: #{graph_transformer_net_forward.1} parent=1 // pred_region
      %27 = dma.done [#allocation3], 2944
    $region17: #{graph_transformer_net_forward.1} parent=1 // pred_fallthru
      _
    %v29 = vld [vmem:[%s0] sm:$0xff]
    %v30 = vld [vmem:[%s0 + $0x8] sm:$0xff]
    %v31 = vpack.c.bf16 %v30, %v29
    %v32 = vld [vmem:[#allocation2] sm:$0xf]
    %v33 = vld [vmem:[#allocation2 + $0x4] sm:$0xf]
    %v34 = vld [vmem:[%s2] sm:$0xff]
    %v35 = vld [vmem:[%s2 + $0x8] sm:$0xff]
    %v38 = vunpack.c.l.b16 %v32
    %v39 = vunpack.c.l.b16 %v33
    %v40 = vpack.c.b16 %v39, %v38
    %vm42 = vcmask 130048
    %v44 = vsel %vm42, %v31, 0
    %46 = vmatprep.subr.bf16.mxu0 0
    %47 = vmatpush1.bf16.msra.mxu0 %v40
    %48 = vmatprep.subr.bf16.mxu0 0
    %49 = vmatpush1.bf16.msra.mxu0 0
    %50 = vmatprep.subr.bf16.mxu0 0
    %51 = vmatpush1.bf16.msra.mxu0 0
    %52 = vmatprep.subr.bf16.mxu0 0
    %53 = vmatpush1.bf16.msra.mxu0 0
    %54 = vmatprep.subr.bf16.mxu0 0
    %55 = vmatpush1.bf16.msra.mxu0 0
    %56 = vmatprep.subr.bf16.mxu0 0
    %57 = vmatpush1.bf16.msra.mxu0 0
    %58 = vmatprep.subr.bf16.mxu0 0
    %59 = vmatpush1.bf16.msra.mxu0 0
    %60 = vmatprep.subr.bf16.mxu0 0
    %61 = vmatpush1.bf16.msra.mxu0 0
    %62 = vmatprep.subr.bf16.mxu0 0
    %63 = vmatpush1.bf16.msra.mxu0 0
    %64 = vmatprep.subr.bf16.mxu0 0
    %65 = vmatpush1.bf16.msra.mxu0 0
    %66 = vmatprep.subr.bf16.mxu0 0
    %67 = vmatpush1.bf16.msra.mxu0 0
    %68 = vmatprep.subr.bf16.mxu0 0
    %69 = vmatpush1.bf16.msra.mxu0 0
    %70 = vmatprep.subr.bf16.mxu0 0
    %71 = vmatpush1.bf16.msra.mxu0 0
    %72 = vmatprep.subr.bf16.mxu0 0
    %73 = vmatpush1.bf16.msra.mxu0 0
    %74 = vmatprep.subr.bf16.mxu0 0
    %75 = vmatpush1.bf16.msra.mxu0 0
    %76 = vmatprep.subr.bf16.mxu0 0
    %77 = vmatpush1.bf16.msra.mxu0 0
    %78 = vmatprep.mubr.bf16.mxu0 0
    %79 = vmatmul.mubr.bf16.gmra.mrb[0].mxu0 %v44
    %v80 = vpop.f32.mrb[0].mxu0
    %v81 = vadd.f32 %v34, %v80
    %v82 = vpop.f32.mrb[0].mxu0
    %v83 = vpop.f32.mrb[0].mxu0
    %v84 = vadd.f32 %v35, %v83
    %v85 = vpop.f32.mrb[0].mxu0
    %86 = vdwg.mxu0
    %v87 = vpack.c.bf16 %v84, %v81
    %v88 = vld [vmem:[#allocation2 + $0x8] sm:$0xf]
    %v89 = vld [vmem:[#allocation2 + $0xc] sm:$0xf]
    %v90 = vld [vmem:[#allocation2 + $0x10] sm:$0xf]
    %v91 = vld [vmem:[#allocation2 + $0x14] sm:$0xf]
    %v96 = vunpack.c.l.b16 %v88
    %v97 = vunpack.c.l.b16 %v89
    %v98 = vunpack.c.l.b16 %v90
    %v99 = vunpack.c.l.b16 %v91
    %v100 = vpack.c.b16 %v97, %v96
    %v101 = vpack.c.b16 %v99, %v98
    %vm104 = vcmask 261120
    %v106 = vsel %vm104, %v87, 0
    %108 = vmatprep.subr.bf16.mxu0 0
    %109 = vmatpush1.bf16.msra.mxu0 %v100
    %110 = vmatprep.subr.bf16.mxu0 0
    %111 = vmatpush1.bf16.msra.mxu0 %v101
    %112 = vmatprep.subr.bf16.mxu0 0
    %113 = vmatpush1.bf16.msra.mxu0 0
    %114 = vmatprep.subr.bf16.mxu0 0
    %115 = vmatpush1.bf16.msra.mxu0 0
    %116 = vmatprep.subr.bf16.mxu0 0
    %117 = vmatpush1.bf16.msra.mxu0 0
    %118 = vmatprep.subr.bf16.mxu0 0
    %119 = vmatpush1.bf16.msra.mxu0 0
    %120 = vmatprep.subr.bf16.mxu0 0
    %121 = vmatpush1.bf16.msra.mxu0 0
    %122 = vmatprep.subr.bf16.mxu0 0
    %123 = vmatpush1.bf16.msra.mxu0 0
    %124 = vmatprep.subr.bf16.mxu0 0
    %125 = vmatpush1.bf16.msra.mxu0 0
    %126 = vmatprep.subr.bf16.mxu0 0
    %127 = vmatpush1.bf16.msra.mxu0 0
    %128 = vmatprep.subr.bf16.mxu0 0
    %129 = vmatpush1.bf16.msra.mxu0 0
    %130 = vmatprep.subr.bf16.mxu0 0
    %131 = vmatpush1.bf16.msra.mxu0 0
    %132 = vmatprep.subr.bf16.mxu0 0
    %133 = vmatpush1.bf16.msra.mxu0 0
    %134 = vmatprep.subr.bf16.mxu0 0
    %135 = vmatpush1.bf16.msra.mxu0 0
    %136 = vmatprep.subr.bf16.mxu0 0
    %137 = vmatpush1.bf16.msra.mxu0 0
    %138 = vmatprep.subr.bf16.mxu0 0
    %139 = vmatpush1.bf16.msra.mxu0 0
    %140 = vmatprep.mubr.bf16.mxu0 0
    %141 = vmatmul.mubr.bf16.gmra.mrb[0].mxu0 %v106
    %v142 = vpop.f32.mrb[0].mxu0
    %v143 = vadd.f32 0.0, %v142
    %v144 = vpop.f32.mrb[0].mxu0
    %v145 = vpop.f32.mrb[0].mxu0
    %v146 = vadd.f32 0.0, %v145
    %v147 = vpop.f32.mrb[0].mxu0
    %148 = vdwg.mxu0
    %151 = vrot.lane.b32.xlu0 %v143, 120
    %v152 = vpop.permute.xlu0 %151
    %153 = vrot.lane.b32.xlu0 %v146, 120
    %v154 = vpop.permute.xlu0 %153
    %155 = vrot.lane.b32.xlu0 %v143, 112
    %v156 = vpop.permute.xlu0 %155
    %157 = vrot.lane.b32.xlu0 %v146, 112
    %v158 = vpop.permute.xlu0 %157
    %159 = vrot.lane.b32.xlu0 %v143, 104
    %v160 = vpop.permute.xlu0 %159
    %161 = vrot.lane.b32.xlu0 %v146, 104
    %v162 = vpop.permute.xlu0 %161
    %163 = vrot.lane.b32.xlu0 %v143, 96
    %v164 = vpop.permute.xlu0 %163
    %165 = vrot.lane.b32.xlu0 %v146, 96
    %v166 = vpop.permute.xlu0 %165
    %vm167 = vcmask 64512
    %v168 = vsel %vm167, %v143, 0
    %v170 = vsel %vm167, %v146, 0
    %v172 = vsel %vm167, %v164, 0
    %v174 = vsel %vm167, %v166, 0
    %176 = vmatprep.subr.mxu0 0.0
    %177 = vmatpush1.xpose.msra.mxu0 %v172
    %178 = vmatprep.subr.mxu0 0.0
    %179 = vmatpush1.xpose.msra.mxu0 %v174
    %180 = vmatprep.subr.mxu0 0.0
    %181 = vmatpush1.xpose.msra.mxu0 0.0
    %182 = vmatprep.subr.mxu0 0.0
    %183 = vmatpush1.xpose.msra.mxu0 0.0
    %184 = vmatprep.subr.mxu0 0.0
    %185 = vmatpush1.xpose.msra.mxu0 0.0
    %186 = vmatprep.subr.mxu0 0.0
    %187 = vmatpush1.xpose.msra.mxu0 0.0
    %188 = vmatprep.subr.mxu0 0.0
    %189 = vmatpush1.xpose.msra.mxu0 0.0
    %190 = vmatprep.subr.mxu0 0.0
    %191 = vmatpush1.xpose.msra.mxu0 0.0
    %192 = vmatprep.subr.mxu0 0.0
    %193 = vmatpush1.xpose.msra.mxu0 0.0
    %194 = vmatprep.subr.mxu0 0.0
    %195 = vmatpush1.xpose.msra.mxu0 0.0
    %196 = vmatprep.subr.mxu0 0.0
    %197 = vmatpush1.xpose.msra.mxu0 0.0
    %198 = vmatprep.subr.mxu0 0.0
    %199 = vmatpush1.xpose.msra.mxu0 0.0
    %200 = vmatprep.subr.mxu0 0.0
    %201 = vmatpush1.xpose.msra.mxu0 0.0
    %202 = vmatprep.subr.mxu0 0.0
    %203 = vmatpush1.xpose.msra.mxu0 0.0
    %204 = vmatprep.subr.mxu0 0.0
    %205 = vmatpush1.xpose.msra.mxu0 0.0
    %206 = vmatprep.subr.mxu0 0.0
    %207 = vmatpush1.xpose.msra.mxu0 0.0
    %208 = vmatprep.subr.mxu0 0.0
    %209 = vmatpush1.xpose.msra.mxu0 0.0
    %210 = vmatprep.subr.mxu0 0.0
    %211 = vmatpush1.xpose.msra.mxu0 0.0
    %212 = vmatprep.subr.mxu0 0.0
    %213 = vmatpush1.xpose.msra.mxu0 0.0
    %214 = vmatprep.subr.mxu0 0.0
    %215 = vmatpush1.xpose.msra.mxu0 0.0
    %216 = vmatprep.subr.mxu0 0.0
    %217 = vmatpush1.xpose.msra.mxu0 0.0
    %218 = vmatprep.subr.mxu0 0.0
    %219 = vmatpush1.xpose.msra.mxu0 0.0
    %220 = vmatprep.subr.mxu0 0.0
    %221 = vmatpush1.xpose.msra.mxu0 0.0
    %222 = vmatprep.subr.mxu0 0.0
    %223 = vmatpush1.xpose.msra.mxu0 0.0
    %224 = vmatprep.subr.mxu0 0.0
    %225 = vmatpush1.xpose.msra.mxu0 0.0
    %226 = vmatprep.subr.mxu0 0.0
    %227 = vmatpush1.xpose.msra.mxu0 0.0
    %228 = vmatprep.subr.mxu0 0.0
    %229 = vmatpush1.xpose.msra.mxu0 0.0
    %230 = vmatprep.subr.mxu0 0.0
    %231 = vmatpush1.xpose.msra.mxu0 0.0
    %232 = vmatprep.subr.mxu0 0.0
    %233 = vmatpush1.xpose.msra.mxu0 0.0
    %234 = vmatprep.subr.mxu0 0.0
    %235 = vmatpush1.xpose.msra.mxu0 0.0
    %236 = vmatprep.subr.mxu0 0.0
    %237 = vmatpush1.xpose.msra.mxu0 0.0
    %238 = vmatprep.subr.mxu0 0.0
    %239 = vmatpush1.xpose.msra.mxu0 0.0
    %240 = vmatprep.mubr.f32.mxu0 0.0
    %241 = vmatmul.mubr.f32.gmra.mrb[0].mxu0 %v168
    %v242 = vpop.f32.mrb[0].mxu0
    %v243 = vadd.f32 0.0, %v242
    %v244 = vpop.f32.mrb[0].mxu0
    %245 = vmatprep.mubr.f32.mxu0 0.0
    %246 = vmatmul.mubr.f32.gmra.mrb[0].mxu0 %v170
    %v247 = vpop.f32.mrb[0].mxu0
    %v248 = vadd.f32 0.0, %v247
    %v249 = vpop.f32.mrb[0].mxu0
    %250 = vdwg.mxu0
    %251 = vrot.lane.b32.xlu0 %v152, 96
    %v252 = vpop.permute.xlu0 %251
    %253 = vrot.lane.b32.xlu0 %v154, 96
    %v254 = vpop.permute.xlu0 %253
    %v255 = vsel %vm167, %v152, 0
    %v257 = vsel %vm167, %v154, 0
    %v259 = vsel %vm167, %v252, 0
    %v261 = vsel %vm167, %v254, 0
    %263 = vmatprep.subr.mxu0 0.0
    %264 = vmatpush1.xpose.msra.mxu0 %v259
    %265 = vmatprep.subr.mxu0 0.0
    %266 = vmatpush1.xpose.msra.mxu0 %v261
    %267 = vmatprep.subr.mxu0 0.0
    %268 = vmatpush1.xpose.msra.mxu0 0.0
    %269 = vmatprep.subr.mxu0 0.0
    %270 = vmatpush1.xpose.msra.mxu0 0.0
    %271 = vmatprep.subr.mxu0 0.0
    %272 = vmatpush1.xpose.msra.mxu0 0.0
    %273 = vmatprep.subr.mxu0 0.0
    %274 = vmatpush1.xpose.msra.mxu0 0.0
    %275 = vmatprep.subr.mxu0 0.0
    %276 = vmatpush1.xpose.msra.mxu0 0.0
    %277 = vmatprep.subr.mxu0 0.0
    %278 = vmatpush1.xpose.msra.mxu0 0.0
    %279 = vmatprep.subr.mxu0 0.0
    %280 = vmatpush1.xpose.msra.mxu0 0.0
    %281 = vmatprep.subr.mxu0 0.0
    %282 = vmatpush1.xpose.msra.mxu0 0.0
    %283 = vmatprep.subr.mxu0 0.0
    %284 = vmatpush1.xpose.msra.mxu0 0.0
    %285 = vmatprep.subr.mxu0 0.0
    %286 = vmatpush1.xpose.msra.mxu0 0.0
    %287 = vmatprep.subr.mxu0 0.0
    %288 = vmatpush1.xpose.msra.mxu0 0.0
    %289 = vmatprep.subr.mxu0 0.0
    %290 = vmatpush1.xpose.msra.mxu0 0.0
    %291 = vmatprep.subr.mxu0 0.0
    %292 = vmatpush1.xpose.msra.mxu0 0.0
    %293 = vmatprep.subr.mxu0 0.0
    %294 = vmatpush1.xpose.msra.mxu0 0.0
    %295 = vmatprep.subr.mxu0 0.0
    %296 = vmatpush1.xpose.msra.mxu0 0.0
    %297 = vmatprep.subr.mxu0 0.0
    %298 = vmatpush1.xpose.msra.mxu0 0.0
    %299 = vmatprep.subr.mxu0 0.0
    %300 = vmatpush1.xpose.msra.mxu0 0.0
    %301 = vmatprep.subr.mxu0 0.0
    %302 = vmatpush1.xpose.msra.mxu0 0.0
    %303 = vmatprep.subr.mxu0 0.0
    %304 = vmatpush1.xpose.msra.mxu0 0.0
    %305 = vmatprep.subr.mxu0 0.0
    %306 = vmatpush1.xpose.msra.mxu0 0.0
    %307 = vmatprep.subr.mxu0 0.0
    %308 = vmatpush1.xpose.msra.mxu0 0.0
    %309 = vmatprep.subr.mxu0 0.0
    %310 = vmatpush1.xpose.msra.mxu0 0.0
    %311 = vmatprep.subr.mxu0 0.0
    %312 = vmatpush1.xpose.msra.mxu0 0.0
    %313 = vmatprep.subr.mxu0 0.0
    %314 = vmatpush1.xpose.msra.mxu0 0.0
    %315 = vmatprep.subr.mxu0 0.0
    %316 = vmatpush1.xpose.msra.mxu0 0.0
    %317 = vmatprep.subr.mxu0 0.0
    %318 = vmatpush1.xpose.msra.mxu0 0.0
    %319 = vmatprep.subr.mxu0 0.0
    %320 = vmatpush1.xpose.msra.mxu0 0.0
    %321 = vmatprep.subr.mxu0 0.0
    %322 = vmatpush1.xpose.msra.mxu0 0.0
    %323 = vmatprep.subr.mxu0 0.0
    %324 = vmatpush1.xpose.msra.mxu0 0.0
    %325 = vmatprep.subr.mxu0 0.0
    %326 = vmatpush1.xpose.msra.mxu0 0.0
    %327 = vmatprep.mubr.f32.mxu0 0.0
    %328 = vmatmul.mubr.f32.gmra.mrb[0].mxu0 %v255
    %v329 = vpop.f32.mrb[0].mxu0
    %v330 = vadd.f32 0.0, %v329
    %v331 = vpop.f32.mrb[0].mxu0
    %332 = vmatprep.mubr.f32.mxu0 0.0
    %333 = vmatmul.mubr.f32.gmra.mrb[0].mxu0 %v257
    %v334 = vpop.f32.mrb[0].mxu0
    %v335 = vadd.f32 0.0, %v334
    %v336 = vpop.f32.mrb[0].mxu0
    %337 = vdwg.mxu0
    %338 = vrot.lane.b32.xlu0 %v156, 96
    %v339 = vpop.permute.xlu0 %338
    %340 = vrot.lane.b32.xlu0 %v158, 96
    %v341 = vpop.permute.xlu0 %340
    %v342 = vsel %vm167, %v156, 0
    %v344 = vsel %vm167, %v158, 0
    %v346 = vsel %vm167, %v339, 0
    %v348 = vsel %vm167, %v341, 0
    %350 = vmatprep.subr.mxu0 0.0
    %351 = vmatpush1.xpose.msra.mxu0 %v346
    %352 = vmatprep.subr.mxu0 0.0
    %353 = vmatpush1.xpose.msra.mxu0 %v348
    %354 = vmatprep.subr.mxu0 0.0
    %355 = vmatpush1.xpose.msra.mxu0 0.0
    %356 = vmatprep.subr.mxu0 0.0
    %357 = vmatpush1.xpose.msra.mxu0 0.0
    %358 = vmatprep.subr.mxu0 0.0
    %359 = vmatpush1.xpose.msra.mxu0 0.0
    %360 = vmatprep.subr.mxu0 0.0
    %361 = vmatpush1.xpose.msra.mxu0 0.0
    %362 = vmatprep.subr.mxu0 0.0
    %363 = vmatpush1.xpose.msra.mxu0 0.0
    %364 = vmatprep.subr.mxu0 0.0
    %365 = vmatpush1.xpose.msra.mxu0 0.0
    %366 = vmatprep.subr.mxu0 0.0
    %367 = vmatpush1.xpose.msra.mxu0 0.0
    %368 = vmatprep.subr.mxu0 0.0
    %369 = vmatpush1.xpose.msra.mxu0 0.0
    %370 = vmatprep.subr.mxu0 0.0
    %371 = vmatpush1.xpose.msra.mxu0 0.0
    %372 = vmatprep.subr.mxu0 0.0
    %373 = vmatpush1.xpose.msra.mxu0 0.0
    %374 = vmatprep.subr.mxu0 0.0
    %375 = vmatpush1.xpose.msra.mxu0 0.0
    %376 = vmatprep.subr.mxu0 0.0
    %377 = vmatpush1.xpose.msra.mxu0 0.0
    %378 = vmatprep.subr.mxu0 0.0
    %379 = vmatpush1.xpose.msra.mxu0 0.0
    %380 = vmatprep.subr.mxu0 0.0
    %381 = vmatpush1.xpose.msra.mxu0 0.0
    %382 = vmatprep.subr.mxu0 0.0
    %383 = vmatpush1.xpose.msra.mxu0 0.0
    %384 = vmatprep.subr.mxu0 0.0
    %385 = vmatpush1.xpose.msra.mxu0 0.0
    %386 = vmatprep.subr.mxu0 0.0
    %387 = vmatpush1.xpose.msra.mxu0 0.0
    %388 = vmatprep.subr.mxu0 0.0
    %389 = vmatpush1.xpose.msra.mxu0 0.0
    %390 = vmatprep.subr.mxu0 0.0
    %391 = vmatpush1.xpose.msra.mxu0 0.0
    %392 = vmatprep.subr.mxu0 0.0
    %393 = vmatpush1.xpose.msra.mxu0 0.0
    %394 = vmatprep.subr.mxu0 0.0
    %395 = vmatpush1.xpose.msra.mxu0 0.0
    %396 = vmatprep.subr.mxu0 0.0
    %397 = vmatpush1.xpose.msra.mxu0 0.0
    %398 = vmatprep.subr.mxu0 0.0
    %399 = vmatpush1.xpose.msra.mxu0 0.0
    %400 = vmatprep.subr.mxu0 0.0
    %401 = vmatpush1.xpose.msra.mxu0 0.0
    %402 = vmatprep.subr.mxu0 0.0
    %403 = vmatpush1.xpose.msra.mxu0 0.0
    %404 = vmatprep.subr.mxu0 0.0
    %405 = vmatpush1.xpose.msra.mxu0 0.0
    %406 = vmatprep.subr.mxu0 0.0
    %407 = vmatpush1.xpose.msra.mxu0 0.0
    %408 = vmatprep.subr.mxu0 0.0
    %409 = vmatpush1.xpose.msra.mxu0 0.0
    %410 = vmatprep.subr.mxu0 0.0
    %411 = vmatpush1.xpose.msra.mxu0 0.0
    %412 = vmatprep.subr.mxu0 0.0
    %413 = vmatpush1.xpose.msra.mxu0 0.0
    %414 = vmatprep.mubr.f32.mxu0 0.0
    %415 = vmatmul.mubr.f32.gmra.mrb[0].mxu0 %v342
    %v416 = vpop.f32.mrb[0].mxu0
    %v417 = vadd.f32 0.0, %v416
    %v418 = vpop.f32.mrb[0].mxu0
    %419 = vmatprep.mubr.f32.mxu0 0.0
    %420 = vmatmul.mubr.f32.gmra.mrb[0].mxu0 %v344
    %v421 = vpop.f32.mrb[0].mxu0
    %v422 = vadd.f32 0.0, %v421
    %v423 = vpop.f32.mrb[0].mxu0
    %424 = vdwg.mxu0
    %425 = vrot.lane.b32.xlu0 %v160, 96
    %v426 = vpop.permute.xlu0 %425
    %427 = vrot.lane.b32.xlu0 %v162, 96
    %v428 = vpop.permute.xlu0 %427
    %v429 = vsel %vm167, %v160, 0
    %v431 = vsel %vm167, %v162, 0
    %v433 = vsel %vm167, %v426, 0
    %v435 = vsel %vm167, %v428, 0
    %437 = vmatprep.subr.mxu0 0.0
    %438 = vmatpush1.xpose.msra.mxu0 %v433
    %439 = vmatprep.subr.mxu0 0.0
    %440 = vmatpush1.xpose.msra.mxu0 %v435
    %441 = vmatprep.subr.mxu0 0.0
    %442 = vmatpush1.xpose.msra.mxu0 0.0
    %443 = vmatprep.subr.mxu0 0.0
    %444 = vmatpush1.xpose.msra.mxu0 0.0
    %445 = vmatprep.subr.mxu0 0.0
    %446 = vmatpush1.xpose.msra.mxu0 0.0
    %447 = vmatprep.subr.mxu0 0.0
    %448 = vmatpush1.xpose.msra.mxu0 0.0
    %449 = vmatprep.subr.mxu0 0.0
    %450 = vmatpush1.xpose.msra.mxu0 0.0
    %451 = vmatprep.subr.mxu0 0.0
    %452 = vmatpush1.xpose.msra.mxu0 0.0
    %453 = vmatprep.subr.mxu0 0.0
    %454 = vmatpush1.xpose.msra.mxu0 0.0
    %455 = vmatprep.subr.mxu0 0.0
    %456 = vmatpush1.xpose.msra.mxu0 0.0
    %457 = vmatprep.subr.mxu0 0.0
    %458 = vmatpush1.xpose.msra.mxu0 0.0
    %459 = vmatprep.subr.mxu0 0.0
    %460 = vmatpush1.xpose.msra.mxu0 0.0
    %461 = vmatprep.subr.mxu0 0.0
    %462 = vmatpush1.xpose.msra.mxu0 0.0
    %463 = vmatprep.subr.mxu0 0.0
    %464 = vmatpush1.xpose.msra.mxu0 0.0
    %465 = vmatprep.subr.mxu0 0.0
    %466 = vmatpush1.xpose.msra.mxu0 0.0
    %467 = vmatprep.subr.mxu0 0.0
    %468 = vmatpush1.xpose.msra.mxu0 0.0
    %469 = vmatprep.subr.mxu0 0.0
    %470 = vmatpush1.xpose.msra.mxu0 0.0
    %471 = vmatprep.subr.mxu0 0.0
    %472 = vmatpush1.xpose.msra.mxu0 0.0
    %473 = vmatprep.subr.mxu0 0.0
    %474 = vmatpush1.xpose.msra.mxu0 0.0
    %475 = vmatprep.subr.mxu0 0.0
    %476 = vmatpush1.xpose.msra.mxu0 0.0
    %477 = vmatprep.subr.mxu0 0.0
    %478 = vmatpush1.xpose.msra.mxu0 0.0
    %479 = vmatprep.subr.mxu0 0.0
    %480 = vmatpush1.xpose.msra.mxu0 0.0
    %481 = vmatprep.subr.mxu0 0.0
    %482 = vmatpush1.xpose.msra.mxu0 0.0
    %483 = vmatprep.subr.mxu0 0.0
    %484 = vmatpush1.xpose.msra.mxu0 0.0
    %485 = vmatprep.subr.mxu0 0.0
    %486 = vmatpush1.xpose.msra.mxu0 0.0
    %487 = vmatprep.subr.mxu0 0.0
    %488 = vmatpush1.xpose.msra.mxu0 0.0
    %489 = vmatprep.subr.mxu0 0.0
    %490 = vmatpush1.xpose.msra.mxu0 0.0
    %491 = vmatprep.subr.mxu0 0.0
    %492 = vmatpush1.xpose.msra.mxu0 0.0
    %493 = vmatprep.subr.mxu0 0.0
    %494 = vmatpush1.xpose.msra.mxu0 0.0
    %495 = vmatprep.subr.mxu0 0.0
    %496 = vmatpush1.xpose.msra.mxu0 0.0
    %497 = vmatprep.subr.mxu0 0.0
    %498 = vmatpush1.xpose.msra.mxu0 0.0
    %499 = vmatprep.subr.mxu0 0.0
    %500 = vmatpush1.xpose.msra.mxu0 0.0
    %501 = vmatprep.mubr.f32.mxu0 0.0
    %502 = vmatmul.mubr.f32.gmra.mrb[0].mxu0 %v429
    %v503 = vpop.f32.mrb[0].mxu0
    %v504 = vadd.f32 0.0, %v503
    %v505 = vpop.f32.mrb[0].mxu0
    %506 = vmatprep.mubr.f32.mxu0 0.0
    %507 = vmatmul.mubr.f32.gmra.mrb[0].mxu0 %v431
    %v508 = vpop.f32.mrb[0].mxu0
    %v509 = vadd.f32 0.0, %v508
    %v510 = vpop.f32.mrb[0].mxu0
    %511 = vdwg.mxu0
    %v512 = vmax.f32 %v243, -5.0
    %v513 = vmax.f32 %v248, -5.0
    %v514 = vmax.f32 %v330, -5.0
    %v515 = vmax.f32 %v335, -5.0
    %v516 = vmax.f32 %v417, -5.0
    %v517 = vmax.f32 %v422, -5.0
    %v518 = vmax.f32 %v504, -5.0
    %v519 = vmax.f32 %v509, -5.0
    %v520 = vmin.f32 %v512, 5.0
    %v521 = vmin.f32 %v513, 5.0
    %v522 = vmin.f32 %v514, 5.0
    %v523 = vmin.f32 %v515, 5.0
    %v524 = vmin.f32 %v516, 5.0
    %v525 = vmin.f32 %v517, 5.0
    %v526 = vmin.f32 %v518, 5.0
    %v527 = vmin.f32 %v519, 5.0
    %v528 = vmul.f32 %v520, 1.442695
    %v529 = vpow.pop %v528
    %v530 = vmul.f32 %v521, 1.442695
    %v531 = vpow.pop %v530
    %v532 = vmul.f32 %v522, 1.442695
    %v533 = vpow.pop %v532
    %v534 = vmul.f32 %v523, 1.442695
    %v535 = vpow.pop %v534
    %v536 = vmul.f32 %v524, 1.442695
    %v537 = vpow.pop %v536
    %v538 = vmul.f32 %v525, 1.442695
    %v539 = vpow.pop %v538
    %v540 = vmul.f32 %v526, 1.442695
    %v541 = vpow.pop %v540
    %v542 = vmul.f32 %v527, 1.442695
    %v543 = vpow.pop %v542
    %546 = vrot.lane.b32.xlu0 %v29, 112
    %v547 = vpop.permute.xlu0 %546
    %548 = vrot.lane.b32.xlu0 %v30, 112
    %v549 = vpop.permute.xlu0 %548
    %v552 = vmul.f32 %v529, %v547
    %v553 = vmul.f32 %v531, %v549
    %v554 = vmul.f32 %v533, %v547
    %v555 = vmul.f32 %v535, %v549
    %v556 = vmul.f32 %v537, %v547
    %v557 = vmul.f32 %v539, %v549
    %v558 = vmul.f32 %v541, %v547
    %v559 = vmul.f32 %v543, %v549
    %v560 = vsel %vm42, %v552, 0.0
    %561 = vadd.xlane.f32.xlu0 %v560
    %v562 = vpop.xlane.xlu0 %561
    %v563 = vsel %vm42, %v553, 0.0
    %564 = vadd.xlane.f32.xlu0 %v563
    %v565 = vpop.xlane.xlu0 %564
    %v566 = vsel %vm42, %v554, 0.0
    %567 = vadd.xlane.f32.xlu0 %v566
    %v568 = vpop.xlane.xlu0 %567
    %v569 = vsel %vm42, %v555, 0.0
    %570 = vadd.xlane.f32.xlu0 %v569
    %v571 = vpop.xlane.xlu0 %570
    %v572 = vsel %vm42, %v556, 0.0
    %573 = vadd.xlane.f32.xlu0 %v572
    %v574 = vpop.xlane.xlu0 %573
    %v575 = vsel %vm42, %v557, 0.0
    %576 = vadd.xlane.f32.xlu0 %v575
    %v577 = vpop.xlane.xlu0 %576
    %v578 = vsel %vm42, %v558, 0.0
    %579 = vadd.xlane.f32.xlu0 %v578
    %v580 = vpop.xlane.xlu0 %579
    %v581 = vsel %vm42, %v559, 0.0
    %582 = vadd.xlane.f32.xlu0 %v581
    %v583 = vpop.xlane.xlu0 %582
    %v584 = vadd.f32 %v562, 1e-06
    %v585 = vadd.f32 %v565, 1e-06
    %v586 = vadd.f32 %v568, 1e-06
    %v587 = vadd.f32 %v571, 1e-06
    %v588 = vadd.f32 %v574, 1e-06
    %v589 = vadd.f32 %v577, 1e-06
    %v590 = vadd.f32 %v580, 1e-06
    %v591 = vadd.f32 %v583, 1e-06
    %592 = vrot.lane.b32.xlu0 %v143, 64
    %v593 = vpop.permute.xlu0 %592
    %594 = vrot.lane.b32.xlu0 %v146, 64
    %v595 = vpop.permute.xlu0 %594
    %v599 = vsel %vm42, %v552, 0
    %v602 = vsel %vm42, %v553, 0
    %604 = vmatprep.subr.mxu0 0.0
    %605 = vmatpush1.msra.mxu0 %v593
    %606 = vmatprep.subr.mxu0 0.0
    %607 = vmatpush1.msra.mxu0 %v595
    %608 = vmatprep.subr.mxu0 0.0
    %609 = vmatpush1.msra.mxu0 0.0
    %610 = vmatprep.subr.mxu0 0.0
    %611 = vmatpush1.msra.mxu0 0.0
    %612 = vmatprep.subr.mxu0 0.0
    %613 = vmatpush1.msra.mxu0 0.0
    %614 = vmatprep.subr.mxu0 0.0
    %615 = vmatpush1.msra.mxu0 0.0
    %616 = vmatprep.subr.mxu0 0.0
    %617 = vmatpush1.msra.mxu0 0.0
    %618 = vmatprep.subr.mxu0 0.0
    %619 = vmatpush1.msra.mxu0 0.0
    %620 = vmatprep.subr.mxu0 0.0
    %621 = vmatpush1.msra.mxu0 0.0
    %622 = vmatprep.subr.mxu0 0.0
    %623 = vmatpush1.msra.mxu0 0.0
    %624 = vmatprep.subr.mxu0 0.0
    %625 = vmatpush1.msra.mxu0 0.0
    %626 = vmatprep.subr.mxu0 0.0
    %627 = vmatpush1.msra.mxu0 0.0
    %628 = vmatprep.subr.mxu0 0.0
    %629 = vmatpush1.msra.mxu0 0.0
    %630 = vmatprep.subr.mxu0 0.0
    %631 = vmatpush1.msra.mxu0 0.0
    %632 = vmatprep.subr.mxu0 0.0
    %633 = vmatpush1.msra.mxu0 0.0
    %634 = vmatprep.subr.mxu0 0.0
    %635 = vmatpush1.msra.mxu0 0.0
    %636 = vmatprep.subr.mxu0 0.0
    %637 = vmatpush1.msra.mxu0 0.0
    %638 = vmatprep.subr.mxu0 0.0
    %639 = vmatpush1.msra.mxu0 0.0
    %640 = vmatprep.subr.mxu0 0.0
    %641 = vmatpush1.msra.mxu0 0.0
    %642 = vmatprep.subr.mxu0 0.0
    %643 = vmatpush1.msra.mxu0 0.0
    %644 = vmatprep.subr.mxu0 0.0
    %645 = vmatpush1.msra.mxu0 0.0
    %646 = vmatprep.subr.mxu0 0.0
    %647 = vmatpush1.msra.mxu0 0.0
    %648 = vmatprep.subr.mxu0 0.0
    %649 = vmatpush1.msra.mxu0 0.0
    %650 = vmatprep.subr.mxu0 0.0
    %651 = vmatpush1.msra.mxu0 0.0
    %652 = vmatprep.subr.mxu0 0.0
    %653 = vmatpush1.msra.mxu0 0.0
    %654 = vmatprep.subr.mxu0 0.0
    %655 = vmatpush1.msra.mxu0 0.0
    %656 = vmatprep.subr.mxu0 0.0
    %657 = vmatpush1.msra.mxu0 0.0
    %658 = vmatprep.subr.mxu0 0.0
    %659 = vmatpush1.msra.mxu0 0.0
    %660 = vmatprep.subr.mxu0 0.0
    %661 = vmatpush1.msra.mxu0 0.0
    %662 = vmatprep.subr.mxu0 0.0
    %663 = vmatpush1.msra.mxu0 0.0
    %664 = vmatprep.subr.mxu0 0.0
    %665 = vmatpush1.msra.mxu0 0.0
    %666 = vmatprep.subr.mxu0 0.0
    %667 = vmatpush1.msra.mxu0 0.0
    %668 = vmatprep.mubr.f32.mxu0 0.0
    %669 = vmatmul.mubr.f32.gmra.mrb[0].mxu0 %v599
    %v670 = vpop.f32.mrb[0].mxu0
    %v671 = vadd.f32 0.0, %v670
    %v672 = vpop.f32.mrb[0].mxu0
    %673 = vmatprep.mubr.f32.mxu0 0.0
    %674 = vmatmul.mubr.f32.gmra.mrb[0].mxu0 %v602
    %v675 = vpop.f32.mrb[0].mxu0
    %v676 = vadd.f32 0.0, %v675
    %v677 = vpop.f32.mrb[0].mxu0
    %678 = vdwg.mxu0
    %679 = vrot.lane.b32.xlu0 %v152, 64
    %v680 = vpop.permute.xlu0 %679
    %681 = vrot.lane.b32.xlu0 %v154, 64
    %v682 = vpop.permute.xlu0 %681
    %v686 = vsel %vm42, %v554, 0
    %v689 = vsel %vm42, %v555, 0
    %691 = vmatprep.subr.mxu0 0.0
    %692 = vmatpush1.msra.mxu0 %v680
    %693 = vmatprep.subr.mxu0 0.0
    %694 = vmatpush1.msra.mxu0 %v682
    %695 = vmatprep.subr.mxu0 0.0
    %696 = vmatpush1.msra.mxu0 0.0
    %697 = vmatprep.subr.mxu0 0.0
    %698 = vmatpush1.msra.mxu0 0.0
    %699 = vmatprep.subr.mxu0 0.0
    %700 = vmatpush1.msra.mxu0 0.0
    %701 = vmatprep.subr.mxu0 0.0
    %702 = vmatpush1.msra.mxu0 0.0
    %703 = vmatprep.subr.mxu0 0.0
    %704 = vmatpush1.msra.mxu0 0.0
    %705 = vmatprep.subr.mxu0 0.0
    %706 = vmatpush1.msra.mxu0 0.0
    %707 = vmatprep.subr.mxu0 0.0
    %708 = vmatpush1.msra.mxu0 0.0
    %709 = vmatprep.subr.mxu0 0.0
    %710 = vmatpush1.msra.mxu0 0.0
    %711 = vmatprep.subr.mxu0 0.0
    %712 = vmatpush1.msra.mxu0 0.0
    %713 = vmatprep.subr.mxu0 0.0
    %714 = vmatpush1.msra.mxu0 0.0
    %715 = vmatprep.subr.mxu0 0.0
    %716 = vmatpush1.msra.mxu0 0.0
    %717 = vmatprep.subr.mxu0 0.0
    %718 = vmatpush1.msra.mxu0 0.0
    %719 = vmatprep.subr.mxu0 0.0
    %720 = vmatpush1.msra.mxu0 0.0
    %721 = vmatprep.subr.mxu0 0.0
    %722 = vmatpush1.msra.mxu0 0.0
    %723 = vmatprep.subr.mxu0 0.0
    %724 = vmatpush1.msra.mxu0 0.0
    %725 = vmatprep.subr.mxu0 0.0
    %726 = vmatpush1.msra.mxu0 0.0
    %727 = vmatprep.subr.mxu0 0.0
    %728 = vmatpush1.msra.mxu0 0.0
    %729 = vmatprep.subr.mxu0 0.0
    %730 = vmatpush1.msra.mxu0 0.0
    %731 = vmatprep.subr.mxu0 0.0
    %732 = vmatpush1.msra.mxu0 0.0
    %733 = vmatprep.subr.mxu0 0.0
    %734 = vmatpush1.msra.mxu0 0.0
    %735 = vmatprep.subr.mxu0 0.0
    %736 = vmatpush1.msra.mxu0 0.0
    %737 = vmatprep.subr.mxu0 0.0
    %738 = vmatpush1.msra.mxu0 0.0
    %739 = vmatprep.subr.mxu0 0.0
    %740 = vmatpush1.msra.mxu0 0.0
    %741 = vmatprep.subr.mxu0 0.0
    %742 = vmatpush1.msra.mxu0 0.0
    %743 = vmatprep.subr.mxu0 0.0
    %744 = vmatpush1.msra.mxu0 0.0
    %745 = vmatprep.subr.mxu0 0.0
    %746 = vmatpush1.msra.mxu0 0.0
    %747 = vmatprep.subr.mxu0 0.0
    %748 = vmatpush1.msra.mxu0 0.0
    %749 = vmatprep.subr.mxu0 0.0
    %750 = vmatpush1.msra.mxu0 0.0
    %751 = vmatprep.subr.mxu0 0.0
    %752 = vmatpush1.msra.mxu0 0.0
    %753 = vmatprep.subr.mxu0 0.0
    %754 = vmatpush1.msra.mxu0 0.0
    %755 = vmatprep.mubr.f32.mxu0 0.0
    %756 = vmatmul.mubr.f32.gmra.mrb[0].mxu0 %v686
    %v757 = vpop.f32.mrb[0].mxu0
    %v758 = vadd.f32 0.0, %v757
    %v759 = vpop.f32.mrb[0].mxu0
    %760 = vmatprep.mubr.f32.mxu0 0.0
    %761 = vmatmul.mubr.f32.gmra.mrb[0].mxu0 %v689
    %v762 = vpop.f32.mrb[0].mxu0
    %v763 = vadd.f32 0.0, %v762
    %v764 = vpop.f32.mrb[0].mxu0
    %765 = vdwg.mxu0
    %766 = vrot.lane.b32.xlu0 %v156, 64
    %v767 = vpop.permute.xlu0 %766
    %768 = vrot.lane.b32.xlu0 %v158, 64
    %v769 = vpop.permute.xlu0 %768
    %v773 = vsel %vm42, %v556, 0
    %v776 = vsel %vm42, %v557, 0
    %778 = vmatprep.subr.mxu0 0.0
    %779 = vmatpush1.msra.mxu0 %v767
    %780 = vmatprep.subr.mxu0 0.0
    %781 = vmatpush1.msra.mxu0 %v769
    %782 = vmatprep.subr.mxu0 0.0
    %783 = vmatpush1.msra.mxu0 0.0
    %784 = vmatprep.subr.mxu0 0.0
    %785 = vmatpush1.msra.mxu0 0.0
    %786 = vmatprep.subr.mxu0 0.0
    %787 = vmatpush1.msra.mxu0 0.0
    %788 = vmatprep.subr.mxu0 0.0
    %789 = vmatpush1.msra.mxu0 0.0
    %790 = vmatprep.subr.mxu0 0.0
    %791 = vmatpush1.msra.mxu0 0.0
    %792 = vmatprep.subr.mxu0 0.0
    %793 = vmatpush1.msra.mxu0 0.0
    %794 = vmatprep.subr.mxu0 0.0
    %795 = vmatpush1.msra.mxu0 0.0
    %796 = vmatprep.subr.mxu0 0.0
    %797 = vmatpush1.msra.mxu0 0.0
    %798 = vmatprep.subr.mxu0 0.0
    %799 = vmatpush1.msra.mxu0 0.0
    %800 = vmatprep.subr.mxu0 0.0
    %801 = vmatpush1.msra.mxu0 0.0
    %802 = vmatprep.subr.mxu0 0.0
    %803 = vmatpush1.msra.mxu0 0.0
    %804 = vmatprep.subr.mxu0 0.0
    %805 = vmatpush1.msra.mxu0 0.0
    %806 = vmatprep.subr.mxu0 0.0
    %807 = vmatpush1.msra.mxu0 0.0
    %808 = vmatprep.subr.mxu0 0.0
    %809 = vmatpush1.msra.mxu0 0.0
    %810 = vmatprep.subr.mxu0 0.0
    %811 = vmatpush1.msra.mxu0 0.0
    %812 = vmatprep.subr.mxu0 0.0
    %813 = vmatpush1.msra.mxu0 0.0
    %814 = vmatprep.subr.mxu0 0.0
    %815 = vmatpush1.msra.mxu0 0.0
    %816 = vmatprep.subr.mxu0 0.0
    %817 = vmatpush1.msra.mxu0 0.0
    %818 = vmatprep.subr.mxu0 0.0
    %819 = vmatpush1.msra.mxu0 0.0
    %820 = vmatprep.subr.mxu0 0.0
    %821 = vmatpush1.msra.mxu0 0.0
    %822 = vmatprep.subr.mxu0 0.0
    %823 = vmatpush1.msra.mxu0 0.0
    %824 = vmatprep.subr.mxu0 0.0
    %825 = vmatpush1.msra.mxu0 0.0
    %826 = vmatprep.subr.mxu0 0.0
    %827 = vmatpush1.msra.mxu0 0.0
    %828 = vmatprep.subr.mxu0 0.0
    %829 = vmatpush1.msra.mxu0 0.0
    %830 = vmatprep.subr.mxu0 0.0
    %831 = vmatpush1.msra.mxu0 0.0
    %832 = vmatprep.subr.mxu0 0.0
    %833 = vmatpush1.msra.mxu0 0.0
    %834 = vmatprep.subr.mxu0 0.0
    %835 = vmatpush1.msra.mxu0 0.0
    %836 = vmatprep.subr.mxu0 0.0
    %837 = vmatpush1.msra.mxu0 0.0
    %838 = vmatprep.subr.mxu0 0.0
    %839 = vmatpush1.msra.mxu0 0.0
    %840 = vmatprep.subr.mxu0 0.0
    %841 = vmatpush1.msra.mxu0 0.0
    %842 = vmatprep.mubr.f32.mxu0 0.0
    %843 = vmatmul.mubr.f32.gmra.mrb[0].mxu0 %v773
    %v844 = vpop.f32.mrb[0].mxu0
    %v845 = vadd.f32 0.0, %v844
    %v846 = vpop.f32.mrb[0].mxu0
    %847 = vmatprep.mubr.f32.mxu0 0.0
    %848 = vmatmul.mubr.f32.gmra.mrb[0].mxu0 %v776
    %v849 = vpop.f32.mrb[0].mxu0
    %v850 = vadd.f32 0.0, %v849
    %v851 = vpop.f32.mrb[0].mxu0
    %852 = vdwg.mxu0
    %853 = vrot.lane.b32.xlu0 %v160, 64
    %v854 = vpop.permute.xlu0 %853
    %855 = vrot.lane.b32.xlu0 %v162, 64
    %v856 = vpop.permute.xlu0 %855
    %v860 = vsel %vm42, %v558, 0
    %v863 = vsel %vm42, %v559, 0
    %865 = vmatprep.subr.mxu0 0.0
    %866 = vmatpush1.msra.mxu0 %v854
    %867 = vmatprep.subr.mxu0 0.0
    %868 = vmatpush1.msra.mxu0 %v856
    %869 = vmatprep.subr.mxu0 0.0
    %870 = vmatpush1.msra.mxu0 0.0
    %871 = vmatprep.subr.mxu0 0.0
    %872 = vmatpush1.msra.mxu0 0.0
    %873 = vmatprep.subr.mxu0 0.0
    %874 = vmatpush1.msra.mxu0 0.0
    %875 = vmatprep.subr.mxu0 0.0
    %876 = vmatpush1.msra.mxu0 0.0
    %877 = vmatprep.subr.mxu0 0.0
    %878 = vmatpush1.msra.mxu0 0.0
    %879 = vmatprep.subr.mxu0 0.0
    %880 = vmatpush1.msra.mxu0 0.0
    %881 = vmatprep.subr.mxu0 0.0
    %882 = vmatpush1.msra.mxu0 0.0
    %883 = vmatprep.subr.mxu0 0.0
    %884 = vmatpush1.msra.mxu0 0.0
    %885 = vmatprep.subr.mxu0 0.0
    %886 = vmatpush1.msra.mxu0 0.0
    %887 = vmatprep.subr.mxu0 0.0
    %888 = vmatpush1.msra.mxu0 0.0
    %889 = vmatprep.subr.mxu0 0.0
    %890 = vmatpush1.msra.mxu0 0.0
    %891 = vmatprep.subr.mxu0 0.0
    %892 = vmatpush1.msra.mxu0 0.0
    %893 = vmatprep.subr.mxu0 0.0
    %894 = vmatpush1.msra.mxu0 0.0
    %895 = vmatprep.subr.mxu0 0.0
    %896 = vmatpush1.msra.mxu0 0.0
    %897 = vmatprep.subr.mxu0 0.0
    %898 = vmatpush1.msra.mxu0 0.0
    %899 = vmatprep.subr.mxu0 0.0
    %900 = vmatpush1.msra.mxu0 0.0
    %901 = vmatprep.subr.mxu0 0.0
    %902 = vmatpush1.msra.mxu0 0.0
    %903 = vmatprep.subr.mxu0 0.0
    %904 = vmatpush1.msra.mxu0 0.0
    %905 = vmatprep.subr.mxu0 0.0
    %906 = vmatpush1.msra.mxu0 0.0
    %907 = vmatprep.subr.mxu0 0.0
    %908 = vmatpush1.msra.mxu0 0.0
    %909 = vmatprep.subr.mxu0 0.0
    %910 = vmatpush1.msra.mxu0 0.0
    %911 = vmatprep.subr.mxu0 0.0
    %912 = vmatpush1.msra.mxu0 0.0
    %913 = vmatprep.subr.mxu0 0.0
    %914 = vmatpush1.msra.mxu0 0.0
    %915 = vmatprep.subr.mxu0 0.0
    %916 = vmatpush1.msra.mxu0 0.0
    %917 = vmatprep.subr.mxu0 0.0
    %918 = vmatpush1.msra.mxu0 0.0
    %919 = vmatprep.subr.mxu0 0.0
    %920 = vmatpush1.msra.mxu0 0.0
    %921 = vmatprep.subr.mxu0 0.0
    %922 = vmatpush1.msra.mxu0 0.0
    %923 = vmatprep.subr.mxu0 0.0
    %924 = vmatpush1.msra.mxu0 0.0
    %925 = vmatprep.subr.mxu0 0.0
    %926 = vmatpush1.msra.mxu0 0.0
    %927 = vmatprep.subr.mxu0 0.0
    %928 = vmatpush1.msra.mxu0 0.0
    %929 = vmatprep.mubr.f32.mxu0 0.0
    %930 = vmatmul.mubr.f32.gmra.mrb[0].mxu0 %v860
    %v931 = vpop.f32.mrb[0].mxu0
    %v932 = vadd.f32 0.0, %v931
    %v933 = vpop.f32.mrb[0].mxu0
    %934 = vmatprep.mubr.f32.mxu0 0.0
    %935 = vmatmul.mubr.f32.gmra.mrb[0].mxu0 %v863
    %v936 = vpop.f32.mrb[0].mxu0
    %v937 = vadd.f32 0.0, %v936
    %v938 = vpop.f32.mrb[0].mxu0
    %939 = vdwg.mxu0
    %v940 = vrcp.pop %v584
    %v941 = vmul.f32 %v671, %v940
    %v942 = vrcp.pop %v585
    %v943 = vmul.f32 %v676, %v942
    %v944 = vrcp.pop %v586
    %v945 = vmul.f32 %v758, %v944
    %v946 = vrcp.pop %v587
    %v947 = vmul.f32 %v763, %v946
    %v948 = vrcp.pop %v588
    %v949 = vmul.f32 %v845, %v948
    %v950 = vrcp.pop %v589
    %v951 = vmul.f32 %v850, %v950
    %v952 = vrcp.pop %v590
    %v953 = vmul.f32 %v932, %v952
    %v954 = vrcp.pop %v591
    %v955 = vmul.f32 %v937, %v954
    %958 = vrot.lane.b32.xlu0 %v945, 8
    %v959 = vpop.permute.xlu0 %958
    %960 = vrot.lane.b32.xlu0 %v947, 8
    %v961 = vpop.permute.xlu0 %960
    %966 = vrot.lane.b32.xlu0 %v949, 16
    %v967 = vpop.permute.xlu0 %966
    %968 = vrot.lane.b32.xlu0 %v951, 16
    %v969 = vpop.permute.xlu0 %968
    %974 = vrot.lane.b32.xlu0 %v953, 24
    %v975 = vpop.permute.xlu0 %974
    %976 = vrot.lane.b32.xlu0 %v955, 24
    %v977 = vpop.permute.xlu0 %976
    %v980 = vsel %vm167, %v941, %v959
    %v981 = vsel %vm167, %v943, %v961
    %v982 = vsel %vm42, %v980, %v967
    %v983 = vsel %vm42, %v981, %v969
    %vm984 = vcmask 195584
    %v985 = vsel %vm984, %v982, %v975
    %v986 = vsel %vm984, %v983, %v977
    %v987 = vpack.c.bf16 %v986, %v985
    %v988 = vld [vmem:[#allocation2 + $0x18] sm:$0xf]
    %v989 = vld [vmem:[#allocation2 + $0x1c] sm:$0xf]
    %v990 = vld [vmem:[#allocation2 + $0x20] sm:$0xf]
    %v991 = vld [vmem:[#allocation2 + $0x24] sm:$0xf]
    %v992 = vld [vmem:[%s2 + $0x10] sm:$0x1]
    %v993 = vlaneseq
    %v994 = vshrl.u32 %v993, 7
    %v995 = vsub.s32 0, %v994
    %v996 = vrot.slane %v992, %v995
    %v1001 = vunpack.c.l.b16 %v988
    %v1002 = vunpack.c.l.b16 %v989
    %v1003 = vunpack.c.l.b16 %v990
    %v1004 = vunpack.c.l.b16 %v991
    %v1005 = vpack.c.b16 %v1002, %v1001
    %v1006 = vpack.c.b16 %v1004, %v1003
    %v1010 = vsel %vm104, %v987, 0
    %1012 = vmatprep.subr.bf16.mxu0 0
    %1013 = vmatpush1.bf16.msra.mxu0 %v1005
    %1014 = vmatprep.subr.bf16.mxu0 0
    %1015 = vmatpush1.bf16.msra.mxu0 %v1006
    %1016 = vmatprep.subr.bf16.mxu0 0
    %1017 = vmatpush1.bf16.msra.mxu0 0
    %1018 = vmatprep.subr.bf16.mxu0 0
    %1019 = vmatpush1.bf16.msra.mxu0 0
    %1020 = vmatprep.subr.bf16.mxu0 0
    %1021 = vmatpush1.bf16.msra.mxu0 0
    %1022 = vmatprep.subr.bf16.mxu0 0
    %1023 = vmatpush1.bf16.msra.mxu0 0
    %1024 = vmatprep.subr.bf16.mxu0 0
    %1025 = vmatpush1.bf16.msra.mxu0 0
    %1026 = vmatprep.subr.bf16.mxu0 0
    %1027 = vmatpush1.bf16.msra.mxu0 0
    %1028 = vmatprep.subr.bf16.mxu0 0
    %1029 = vmatpush1.bf16.msra.mxu0 0
    %1030 = vmatprep.subr.bf16.mxu0 0
    %1031 = vmatpush1.bf16.msra.mxu0 0
    %1032 = vmatprep.subr.bf16.mxu0 0
    %1033 = vmatpush1.bf16.msra.mxu0 0
    %1034 = vmatprep.subr.bf16.mxu0 0
    %1035 = vmatpush1.bf16.msra.mxu0 0
    %1036 = vmatprep.subr.bf16.mxu0 0
    %1037 = vmatpush1.bf16.msra.mxu0 0
    %1038 = vmatprep.subr.bf16.mxu0 0
    %1039 = vmatpush1.bf16.msra.mxu0 0
    %1040 = vmatprep.subr.bf16.mxu0 0
    %1041 = vmatpush1.bf16.msra.mxu0 0
    %1042 = vmatprep.subr.bf16.mxu0 0
    %1043 = vmatpush1.bf16.msra.mxu0 0
    %1044 = vmatprep.mubr.bf16.mxu0 0
    %1045 = vmatmul.mubr.bf16.gmra.mrb[0].mxu0 %v1010
    %v1046 = vpop.f32.mrb[0].mxu0
    %v1047 = vadd.f32 %v996, %v1046
    %v1048 = vpop.f32.mrb[0].mxu0
    %v1049 = vpop.f32.mrb[0].mxu0
    %v1050 = vadd.f32 %v996, %v1049
    %v1051 = vpop.f32.mrb[0].mxu0
    %1052 = vdwg.mxu0
    %v1053 = vadd.f32 %v81, %v1047
    %v1054 = vadd.f32 %v84, %v1050
    %v1055 = vsel %vm104, %v1053, 0.0
    %1056 = vadd.xlane.f32.xlu0 %v1055
    %v1057 = vpop.xlane.xlu0 %1056
    %v1058 = vsel %vm104, %v1054, 0.0
    %1059 = vadd.xlane.f32.xlu0 %v1058
    %v1060 = vpop.xlane.xlu0 %1059
    %v1061 = vrcp.pop 32.0
    %v1062 = vmul.f32 %v1057, %v1061
    %v1063 = vmul.f32 %v1060, %v1061
    %v1064 = vsub.f32 %v1053, %v1062
    %v1065 = vsub.f32 %v1054, %v1063
    %v1066 = vmul.f32 %v1064, %v1064
    %v1067 = vmul.f32 %v1065, %v1065
    %v1068 = vsel %vm104, %v1066, 0.0
    %1069 = vadd.xlane.f32.xlu0 %v1068
    %v1070 = vpop.xlane.xlu0 %1069
    %v1071 = vsel %vm104, %v1067, 0.0
    %1072 = vadd.xlane.f32.xlu0 %v1071
    %v1073 = vpop.xlane.xlu0 %1072
    %v1074 = vmul.f32 %v1070, %v1061
    %v1075 = vmul.f32 %v1073, %v1061
    %v1076 = vadd.f32 %v1074, 1e-05
    %v1077 = vadd.f32 %v1075, 1e-05
    %v1078 = vrsqrt.pop %v1076
    %v1079 = vrsqrt.pop %v1077
    %v1080 = vmul.f32 %v1064, %v1078
    %v1081 = vmul.f32 %v1065, %v1079
    %v1082 = vld [vmem:[%s2 + $0x18] sm:$0x1]
    %v1083 = vlaneseq
    %v1084 = vshrl.u32 %v1083, 7
    %v1085 = vsub.s32 0, %v1084
    %v1086 = vrot.slane %v1082, %v1085
    %v1087 = vmul.f32 %v1080, %v1086
    %v1088 = vmul.f32 %v1081, %v1086
    %v1089 = vld [vmem:[%s2 + $0x20] sm:$0x1]
    %v1090 = vlaneseq
    %v1091 = vshrl.u32 %v1090, 7
    %v1092 = vsub.s32 0, %v1091
    %v1093 = vrot.slane %v1089, %v1092
    %v1094 = vadd.f32 %v1087, %v1093
    %v1095 = vadd.f32 %v1088, %v1093
    %v1096 = vpack.c.bf16 %v1095, %v1094
    %v1097 = vld [vmem:[#allocation2 + $0x28] sm:$0xf]
    %v1098 = vld [vmem:[#allocation2 + $0x2c] sm:$0xf]
    %v1099 = vld [vmem:[#allocation2 + $0x30] sm:$0xf]
    %v1100 = vld [vmem:[#allocation2 + $0x34] sm:$0xf]
    %v1101 = vld [vmem:[%s2 + $0x28] sm:$0x1]
    %v1102 = vlaneseq
    %v1103 = vshrl.u32 %v1102, 7
    %v1104 = vsub.s32 0, %v1103
    %v1105 = vrot.slane %v1101, %v1104
    %v1110 = vunpack.c.l.b16 %v1097
    %v1111 = vunpack.c.l.b16 %v1098
    %v1112 = vunpack.c.l.b16 %v1099
    %v1113 = vunpack.c.l.b16 %v1100
    %v1114 = vpack.c.b16 %v1111, %v1110
    %v1115 = vpack.c.b16 %v1113, %v1112
    %v1119 = vsel %vm104, %v1096, 0
    %1121 = vmatprep.subr.bf16.mxu0 0
    %1122 = vmatpush1.bf16.msra.mxu0 %v1114
    %1123 = vmatprep.subr.bf16.mxu0 0
    %1124 = vmatpush1.bf16.msra.mxu0 %v1115
    %1125 = vmatprep.subr.bf16.mxu0 0
    %1126 = vmatpush1.bf16.msra.mxu0 0
    %1127 = vmatprep.subr.bf16.mxu0 0
    %1128 = vmatpush1.bf16.msra.mxu0 0
    %1129 = vmatprep.subr.bf16.mxu0 0
    %1130 = vmatpush1.bf16.msra.mxu0 0
    %1131 = vmatprep.subr.bf16.mxu0 0
    %1132 = vmatpush1.bf16.msra.mxu0 0
    %1133 = vmatprep.subr.bf16.mxu0 0
    %1134 = vmatpush1.bf16.msra.mxu0 0
    %1135 = vmatprep.subr.bf16.mxu0 0
    %1136 = vmatpush1.bf16.msra.mxu0 0
    %1137 = vmatprep.subr.bf16.mxu0 0
    %1138 = vmatpush1.bf16.msra.mxu0 0
    %1139 = vmatprep.subr.bf16.mxu0 0
    %1140 = vmatpush1.bf16.msra.mxu0 0
    %1141 = vmatprep.subr.bf16.mxu0 0
    %1142 = vmatpush1.bf16.msra.mxu0 0
    %1143 = vmatprep.subr.bf16.mxu0 0
    %1144 = vmatpush1.bf16.msra.mxu0 0
    %1145 = vmatprep.subr.bf16.mxu0 0
    %1146 = vmatpush1.bf16.msra.mxu0 0
    %1147 = vmatprep.subr.bf16.mxu0 0
    %1148 = vmatpush1.bf16.msra.mxu0 0
    %1149 = vmatprep.subr.bf16.mxu0 0
    %1150 = vmatpush1.bf16.msra.mxu0 0
    %1151 = vmatprep.subr.bf16.mxu0 0
    %1152 = vmatpush1.bf16.msra.mxu0 0
    %1153 = vmatprep.mubr.bf16.mxu0 0
    %1154 = vmatmul.mubr.bf16.gmra.mrb[0].mxu0 %v1119
    %v1155 = vpop.f32.mrb[0].mxu0
    %v1156 = vadd.f32 %v1105, %v1155
    %v1157 = vpop.f32.mrb[0].mxu0
    %v1158 = vpop.f32.mrb[0].mxu0
    %v1159 = vadd.f32 %v1105, %v1158
    %v1160 = vpop.f32.mrb[0].mxu0
    %1161 = vdwg.mxu0
    %v1162 = vmax.f32 %v1156, 0.0
    %v1163 = vmax.f32 %v1159, 0.0
    %v1164 = vpack.c.bf16 %v1163, %v1162
    %v1165 = vld [vmem:[#allocation2 + $0x38] sm:$0xf]
    %v1166 = vld [vmem:[#allocation2 + $0x3c] sm:$0xf]
    %v1167 = vld [vmem:[#allocation2 + $0x40] sm:$0xf]
    %v1168 = vld [vmem:[#allocation2 + $0x44] sm:$0xf]
    %v1169 = vld [vmem:[#allocation2 + $0x48] sm:$0xf]
    %v1170 = vld [vmem:[#allocation2 + $0x4c] sm:$0xf]
    %v1171 = vld [vmem:[#allocation2 + $0x50] sm:$0xf]
    %v1172 = vld [vmem:[#allocation2 + $0x54] sm:$0xf]
    %v1173 = vld [vmem:[%s2 + $0x30] sm:$0x1]
    %v1174 = vlaneseq
    %v1175 = vshrl.u32 %v1174, 7
    %v1176 = vsub.s32 0, %v1175
    %v1177 = vrot.slane %v1173, %v1176
    %v1186 = vunpack.c.l.b16 %v1165
    %v1187 = vunpack.c.l.b16 %v1166
    %v1188 = vunpack.c.l.b16 %v1167
    %v1189 = vunpack.c.l.b16 %v1168
    %v1190 = vunpack.c.l.b16 %v1169
    %v1191 = vunpack.c.l.b16 %v1170
    %v1192 = vunpack.c.l.b16 %v1171
    %v1193 = vunpack.c.l.b16 %v1172
    %v1194 = vpack.c.b16 %v1187, %v1186
    %v1195 = vpack.c.b16 %v1189, %v1188
    %v1196 = vpack.c.b16 %v1191, %v1190
    %v1197 = vpack.c.b16 %v1193, %v1192
    %vm1202 = vcmask 523264
    %v1204 = vsel %vm1202, %v1164, 0
    %1206 = vmatprep.subr.bf16.mxu0 0
    %1207 = vmatpush1.bf16.msra.mxu0 %v1194
    %1208 = vmatprep.subr.bf16.mxu0 0
    %1209 = vmatpush1.bf16.msra.mxu0 %v1195
    %1210 = vmatprep.subr.bf16.mxu0 0
    %1211 = vmatpush1.bf16.msra.mxu0 %v1196
    %1212 = vmatprep.subr.bf16.mxu0 0
    %1213 = vmatpush1.bf16.msra.mxu0 %v1197
    %1214 = vmatprep.subr.bf16.mxu0 0
    %1215 = vmatpush1.bf16.msra.mxu0 0
    %1216 = vmatprep.subr.bf16.mxu0 0
    %1217 = vmatpush1.bf16.msra.mxu0 0
    %1218 = vmatprep.subr.bf16.mxu0 0
    %1219 = vmatpush1.bf16.msra.mxu0 0
    %1220 = vmatprep.subr.bf16.mxu0 0
    %1221 = vmatpush1.bf16.msra.mxu0 0
    %1222 = vmatprep.subr.bf16.mxu0 0
    %1223 = vmatpush1.bf16.msra.mxu0 0
    %1224 = vmatprep.subr.bf16.mxu0 0
    %1225 = vmatpush1.bf16.msra.mxu0 0
    %1226 = vmatprep.subr.bf16.mxu0 0
    %1227 = vmatpush1.bf16.msra.mxu0 0
    %1228 = vmatprep.subr.bf16.mxu0 0
    %1229 = vmatpush1.bf16.msra.mxu0 0
    %1230 = vmatprep.subr.bf16.mxu0 0
    %1231 = vmatpush1.bf16.msra.mxu0 0
    %1232 = vmatprep.subr.bf16.mxu0 0
    %1233 = vmatpush1.bf16.msra.mxu0 0
    %1234 = vmatprep.subr.bf16.mxu0 0
    %1235 = vmatpush1.bf16.msra.mxu0 0
    %1236 = vmatprep.subr.bf16.mxu0 0
    %1237 = vmatpush1.bf16.msra.mxu0 0
    %1238 = vmatprep.mubr.bf16.mxu0 0
    %1239 = vmatmul.mubr.bf16.gmra.mrb[0].mxu0 %v1204
    %v1240 = vpop.f32.mrb[0].mxu0
    %v1241 = vadd.f32 %v1177, %v1240
    %v1242 = vpop.f32.mrb[0].mxu0
    %v1243 = vpop.f32.mrb[0].mxu0
    %v1244 = vadd.f32 %v1177, %v1243
    %v1245 = vpop.f32.mrb[0].mxu0
    %1246 = vdwg.mxu0
    %v1247 = vadd.f32 %v1094, %v1241
    %v1248 = vadd.f32 %v1095, %v1244
    %v1249 = vsel %vm104, %v1247, 0.0
    %1250 = vadd.xlane.f32.xlu0 %v1249
    %v1251 = vpop.xlane.xlu0 %1250
    %v1252 = vsel %vm104, %v1248, 0.0
    %1253 = vadd.xlane.f32.xlu0 %v1252
    %v1254 = vpop.xlane.xlu0 %1253
    %v1255 = vmul.f32 %v1251, %v1061
    %v1256 = vmul.f32 %v1254, %v1061
    %v1257 = vsub.f32 %v1247, %v1255
    %v1258 = vsub.f32 %v1248, %v1256
    %v1259 = vmul.f32 %v1257, %v1257
    %v1260 = vmul.f32 %v1258, %v1258
    %v1261 = vsel %vm104, %v1259, 0.0
    %1262 = vadd.xlane.f32.xlu0 %v1261
    %v1263 = vpop.xlane.xlu0 %1262
    %v1264 = vsel %vm104, %v1260, 0.0
    %1265 = vadd.xlane.f32.xlu0 %v1264
    %v1266 = vpop.xlane.xlu0 %1265
    %v1267 = vmul.f32 %v1263, %v1061
    %v1268 = vmul.f32 %v1266, %v1061
    %v1269 = vadd.f32 %v1267, 1e-05
    %v1270 = vadd.f32 %v1268, 1e-05
    %v1271 = vrsqrt.pop %v1269
    %v1272 = vrsqrt.pop %v1270
    %v1273 = vmul.f32 %v1257, %v1271
    %v1274 = vmul.f32 %v1258, %v1272
    %v1275 = vld [vmem:[%s2 + $0x38] sm:$0x1]
    %v1276 = vlaneseq
    %v1277 = vshrl.u32 %v1276, 7
    %v1278 = vsub.s32 0, %v1277
    %v1279 = vrot.slane %v1275, %v1278
    %v1280 = vmul.f32 %v1273, %v1279
    %v1281 = vmul.f32 %v1274, %v1279
    %v1282 = vld [vmem:[%s2 + $0x40] sm:$0x1]
    %v1283 = vlaneseq
    %v1284 = vshrl.u32 %v1283, 7
    %v1285 = vsub.s32 0, %v1284
    %v1286 = vrot.slane %v1282, %v1285
    %v1287 = vadd.f32 %v1280, %v1286
    %v1288 = vadd.f32 %v1281, %v1286
    %v1289 = vpack.c.bf16 %v1288, %v1287
    %v1290 = vld [vmem:[#allocation2 + $0x58] sm:$0xf]
    %v1291 = vld [vmem:[#allocation2 + $0x5c] sm:$0xf]
    %v1292 = vld [vmem:[#allocation2 + $0x60] sm:$0xf]
    %v1293 = vld [vmem:[#allocation2 + $0x64] sm:$0xf]
    %v1298 = vunpack.c.l.b16 %v1290
    %v1299 = vunpack.c.l.b16 %v1291
    %v1300 = vunpack.c.l.b16 %v1292
    %v1301 = vunpack.c.l.b16 %v1293
    %v1302 = vpack.c.b16 %v1299, %v1298
    %v1303 = vpack.c.b16 %v1301, %v1300
    %v1307 = vsel %vm104, %v1289, 0
    %1309 = vmatprep.subr.bf16.mxu0 0
    %1310 = vmatpush1.bf16.msra.mxu0 %v1302
    %1311 = vmatprep.subr.bf16.mxu0 0
    %1312 = vmatpush1.bf16.msra.mxu0 %v1303
    %1313 = vmatprep.subr.bf16.mxu0 0
    %1314 = vmatpush1.bf16.msra.mxu0 0
    %1315 = vmatprep.subr.bf16.mxu0 0
    %1316 = vmatpush1.bf16.msra.mxu0 0
    %1317 = vmatprep.subr.bf16.mxu0 0
    %1318 = vmatpush1.bf16.msra.mxu0 0
    %1319 = vmatprep.subr.bf16.mxu0 0
    %1320 = vmatpush1.bf16.msra.mxu0 0
    %1321 = vmatprep.subr.bf16.mxu0 0
    %1322 = vmatpush1.bf16.msra.mxu0 0
    %1323 = vmatprep.subr.bf16.mxu0 0
    %1324 = vmatpush1.bf16.msra.mxu0 0
    %1325 = vmatprep.subr.bf16.mxu0 0
    %1326 = vmatpush1.bf16.msra.mxu0 0
    %1327 = vmatprep.subr.bf16.mxu0 0
    %1328 = vmatpush1.bf16.msra.mxu0 0
    %1329 = vmatprep.subr.bf16.mxu0 0
    %1330 = vmatpush1.bf16.msra.mxu0 0
    %1331 = vmatprep.subr.bf16.mxu0 0
    %1332 = vmatpush1.bf16.msra.mxu0 0
    %1333 = vmatprep.subr.bf16.mxu0 0
    %1334 = vmatpush1.bf16.msra.mxu0 0
    %1335 = vmatprep.subr.bf16.mxu0 0
    %1336 = vmatpush1.bf16.msra.mxu0 0
    %1337 = vmatprep.subr.bf16.mxu0 0
    %1338 = vmatpush1.bf16.msra.mxu0 0
    %1339 = vmatprep.subr.bf16.mxu0 0
    %1340 = vmatpush1.bf16.msra.mxu0 0
    %1341 = vmatprep.mubr.bf16.mxu0 0
    %1342 = vmatmul.mubr.bf16.gmra.mrb[0].mxu0 %v1307
    %v1343 = vpop.f32.mrb[0].mxu0
    %v1344 = vadd.f32 0.0, %v1343
    %v1345 = vpop.f32.mrb[0].mxu0
    %v1346 = vpop.f32.mrb[0].mxu0
    %v1347 = vadd.f32 0.0, %v1346
    %v1348 = vpop.f32.mrb[0].mxu0
    %1349 = vdwg.mxu0
    %1352 = vrot.lane.b32.xlu0 %v1344, 120
    %v1353 = vpop.permute.xlu0 %1352
    %1354 = vrot.lane.b32.xlu0 %v1347, 120
    %v1355 = vpop.permute.xlu0 %1354
    %1356 = vrot.lane.b32.xlu0 %v1344, 112
    %v1357 = vpop.permute.xlu0 %1356
    %1358 = vrot.lane.b32.xlu0 %v1347, 112
    %v1359 = vpop.permute.xlu0 %1358
    %1360 = vrot.lane.b32.xlu0 %v1344, 104
    %v1361 = vpop.permute.xlu0 %1360
    %1362 = vrot.lane.b32.xlu0 %v1347, 104
    %v1363 = vpop.permute.xlu0 %1362
    %1364 = vrot.lane.b32.xlu0 %v1344, 96
    %v1365 = vpop.permute.xlu0 %1364
    %1366 = vrot.lane.b32.xlu0 %v1347, 96
    %v1367 = vpop.permute.xlu0 %1366
    %v1368 = vsel %vm167, %v1344, 0
    %v1370 = vsel %vm167, %v1347, 0
    %v1372 = vsel %vm167, %v1365, 0
    %v1374 = vsel %vm167, %v1367, 0
    %1376 = vmatprep.subr.mxu0 0.0
    %1377 = vmatpush1.xpose.msra.mxu0 %v1372
    %1378 = vmatprep.subr.mxu0 0.0
    %1379 = vmatpush1.xpose.msra.mxu0 %v1374
    %1380 = vmatprep.subr.mxu0 0.0
    %1381 = vmatpush1.xpose.msra.mxu0 0.0
    %1382 = vmatprep.subr.mxu0 0.0
    %1383 = vmatpush1.xpose.msra.mxu0 0.0
    %1384 = vmatprep.subr.mxu0 0.0
    %1385 = vmatpush1.xpose.msra.mxu0 0.0
    %1386 = vmatprep.subr.mxu0 0.0
    %1387 = vmatpush1.xpose.msra.mxu0 0.0
    %1388 = vmatprep.subr.mxu0 0.0
    %1389 = vmatpush1.xpose.msra.mxu0 0.0
    %1390 = vmatprep.subr.mxu0 0.0
    %1391 = vmatpush1.xpose.msra.mxu0 0.0
    %1392 = vmatprep.subr.mxu0 0.0
    %1393 = vmatpush1.xpose.msra.mxu0 0.0
    %1394 = vmatprep.subr.mxu0 0.0
    %1395 = vmatpush1.xpose.msra.mxu0 0.0
    %1396 = vmatprep.subr.mxu0 0.0
    %1397 = vmatpush1.xpose.msra.mxu0 0.0
    %1398 = vmatprep.subr.mxu0 0.0
    %1399 = vmatpush1.xpose.msra.mxu0 0.0
    %1400 = vmatprep.subr.mxu0 0.0
    %1401 = vmatpush1.xpose.msra.mxu0 0.0
    %1402 = vmatprep.subr.mxu0 0.0
    %1403 = vmatpush1.xpose.msra.mxu0 0.0
    %1404 = vmatprep.subr.mxu0 0.0
    %1405 = vmatpush1.xpose.msra.mxu0 0.0
    %1406 = vmatprep.subr.mxu0 0.0
    %1407 = vmatpush1.xpose.msra.mxu0 0.0
    %1408 = vmatprep.subr.mxu0 0.0
    %1409 = vmatpush1.xpose.msra.mxu0 0.0
    %1410 = vmatprep.subr.mxu0 0.0
    %1411 = vmatpush1.xpose.msra.mxu0 0.0
    %1412 = vmatprep.subr.mxu0 0.0
    %1413 = vmatpush1.xpose.msra.mxu0 0.0
    %1414 = vmatprep.subr.mxu0 0.0
    %1415 = vmatpush1.xpose.msra.mxu0 0.0
    %1416 = vmatprep.subr.mxu0 0.0
    %1417 = vmatpush1.xpose.msra.mxu0 0.0
    %1418 = vmatprep.subr.mxu0 0.0
    %1419 = vmatpush1.xpose.msra.mxu0 0.0
    %1420 = vmatprep.subr.mxu0 0.0
    %1421 = vmatpush1.xpose.msra.mxu0 0.0
    %1422 = vmatprep.subr.mxu0 0.0
    %1423 = vmatpush1.xpose.msra.mxu0 0.0
    %1424 = vmatprep.subr.mxu0 0.0
    %1425 = vmatpush1.xpose.msra.mxu0 0.0
    %1426 = vmatprep.subr.mxu0 0.0
    %1427 = vmatpush1.xpose.msra.mxu0 0.0
    %1428 = vmatprep.subr.mxu0 0.0
    %1429 = vmatpush1.xpose.msra.mxu0 0.0
    %1430 = vmatprep.subr.mxu0 0.0
    %1431 = vmatpush1.xpose.msra.mxu0 0.0
    %1432 = vmatprep.subr.mxu0 0.0
    %1433 = vmatpush1.xpose.msra.mxu0 0.0
    %1434 = vmatprep.subr.mxu0 0.0
    %1435 = vmatpush1.xpose.msra.mxu0 0.0
    %1436 = vmatprep.subr.mxu0 0.0
    %1437 = vmatpush1.xpose.msra.mxu0 0.0
    %1438 = vmatprep.subr.mxu0 0.0
    %1439 = vmatpush1.xpose.msra.mxu0 0.0
    %1440 = vmatprep.mubr.f32.mxu0 0.0
    %1441 = vmatmul.mubr.f32.gmra.mrb[0].mxu0 %v1368
    %v1442 = vpop.f32.mrb[0].mxu0
    %v1443 = vadd.f32 0.0, %v1442
    %v1444 = vpop.f32.mrb[0].mxu0
    %1445 = vmatprep.mubr.f32.mxu0 0.0
    %1446 = vmatmul.mubr.f32.gmra.mrb[0].mxu0 %v1370
    %v1447 = vpop.f32.mrb[0].mxu0
    %v1448 = vadd.f32 0.0, %v1447
    %v1449 = vpop.f32.mrb[0].mxu0
    %1450 = vdwg.mxu0
    %1451 = vrot.lane.b32.xlu0 %v1353, 96
    %v1452 = vpop.permute.xlu0 %1451
    %1453 = vrot.lane.b32.xlu0 %v1355, 96
    %v1454 = vpop.permute.xlu0 %1453
    %v1455 = vsel %vm167, %v1353, 0
    %v1457 = vsel %vm167, %v1355, 0
    %v1459 = vsel %vm167, %v1452, 0
    %v1461 = vsel %vm167, %v1454, 0
    %1463 = vmatprep.subr.mxu0 0.0
    %1464 = vmatpush1.xpose.msra.mxu0 %v1459
    %1465 = vmatprep.subr.mxu0 0.0
    %1466 = vmatpush1.xpose.msra.mxu0 %v1461
    %1467 = vmatprep.subr.mxu0 0.0
    %1468 = vmatpush1.xpose.msra.mxu0 0.0
    %1469 = vmatprep.subr.mxu0 0.0
    %1470 = vmatpush1.xpose.msra.mxu0 0.0
    %1471 = vmatprep.subr.mxu0 0.0
    %1472 = vmatpush1.xpose.msra.mxu0 0.0
    %1473 = vmatprep.subr.mxu0 0.0
    %1474 = vmatpush1.xpose.msra.mxu0 0.0
    %1475 = vmatprep.subr.mxu0 0.0
    %1476 = vmatpush1.xpose.msra.mxu0 0.0
    %1477 = vmatprep.subr.mxu0 0.0
    %1478 = vmatpush1.xpose.msra.mxu0 0.0
    %1479 = vmatprep.subr.mxu0 0.0
    %1480 = vmatpush1.xpose.msra.mxu0 0.0
    %1481 = vmatprep.subr.mxu0 0.0
    %1482 = vmatpush1.xpose.msra.mxu0 0.0
    %1483 = vmatprep.subr.mxu0 0.0
    %1484 = vmatpush1.xpose.msra.mxu0 0.0
    %1485 = vmatprep.subr.mxu0 0.0
    %1486 = vmatpush1.xpose.msra.mxu0 0.0
    %1487 = vmatprep.subr.mxu0 0.0
    %1488 = vmatpush1.xpose.msra.mxu0 0.0
    %1489 = vmatprep.subr.mxu0 0.0
    %1490 = vmatpush1.xpose.msra.mxu0 0.0
    %1491 = vmatprep.subr.mxu0 0.0
    %1492 = vmatpush1.xpose.msra.mxu0 0.0
    %1493 = vmatprep.subr.mxu0 0.0
    %1494 = vmatpush1.xpose.msra.mxu0 0.0
    %1495 = vmatprep.subr.mxu0 0.0
    %1496 = vmatpush1.xpose.msra.mxu0 0.0
    %1497 = vmatprep.subr.mxu0 0.0
    %1498 = vmatpush1.xpose.msra.mxu0 0.0
    %1499 = vmatprep.subr.mxu0 0.0
    %1500 = vmatpush1.xpose.msra.mxu0 0.0
    %1501 = vmatprep.subr.mxu0 0.0
    %1502 = vmatpush1.xpose.msra.mxu0 0.0
    %1503 = vmatprep.subr.mxu0 0.0
    %1504 = vmatpush1.xpose.msra.mxu0 0.0
    %1505 = vmatprep.subr.mxu0 0.0
    %1506 = vmatpush1.xpose.msra.mxu0 0.0
    %1507 = vmatprep.subr.mxu0 0.0
    %1508 = vmatpush1.xpose.msra.mxu0 0.0
    %1509 = vmatprep.subr.mxu0 0.0
    %1510 = vmatpush1.xpose.msra.mxu0 0.0
    %1511 = vmatprep.subr.mxu0 0.0
    %1512 = vmatpush1.xpose.msra.mxu0 0.0
    %1513 = vmatprep.subr.mxu0 0.0
    %1514 = vmatpush1.xpose.msra.mxu0 0.0
    %1515 = vmatprep.subr.mxu0 0.0
    %1516 = vmatpush1.xpose.msra.mxu0 0.0
    %1517 = vmatprep.subr.mxu0 0.0
    %1518 = vmatpush1.xpose.msra.mxu0 0.0
    %1519 = vmatprep.subr.mxu0 0.0
    %1520 = vmatpush1.xpose.msra.mxu0 0.0
    %1521 = vmatprep.subr.mxu0 0.0
    %1522 = vmatpush1.xpose.msra.mxu0 0.0
    %1523 = vmatprep.subr.mxu0 0.0
    %1524 = vmatpush1.xpose.msra.mxu0 0.0
    %1525 = vmatprep.subr.mxu0 0.0
    %1526 = vmatpush1.xpose.msra.mxu0 0.0
    %1527 = vmatprep.mubr.f32.mxu0 0.0
    %1528 = vmatmul.mubr.f32.gmra.mrb[0].mxu0 %v1455
    %v1529 = vpop.f32.mrb[0].mxu0
    %v1530 = vadd.f32 0.0, %v1529
    %v1531 = vpop.f32.mrb[0].mxu0
    %1532 = vmatprep.mubr.f32.mxu0 0.0
    %1533 = vmatmul.mubr.f32.gmra.mrb[0].mxu0 %v1457
    %v1534 = vpop.f32.mrb[0].mxu0
    %v1535 = vadd.f32 0.0, %v1534
    %v1536 = vpop.f32.mrb[0].mxu0
    %1537 = vdwg.mxu0
    %1538 = vrot.lane.b32.xlu0 %v1357, 96
    %v1539 = vpop.permute.xlu0 %1538
    %1540 = vrot.lane.b32.xlu0 %v1359, 96
    %v1541 = vpop.permute.xlu0 %1540
    %v1542 = vsel %vm167, %v1357, 0
    %v1544 = vsel %vm167, %v1359, 0
    %v1546 = vsel %vm167, %v1539, 0
    %v1548 = vsel %vm167, %v1541, 0
    %1550 = vmatprep.subr.mxu0 0.0
    %1551 = vmatpush1.xpose.msra.mxu0 %v1546
    %1552 = vmatprep.subr.mxu0 0.0
    %1553 = vmatpush1.xpose.msra.mxu0 %v1548
    %1554 = vmatprep.subr.mxu0 0.0
    %1555 = vmatpush1.xpose.msra.mxu0 0.0
    %1556 = vmatprep.subr.mxu0 0.0
    %1557 = vmatpush1.xpose.msra.mxu0 0.0
    %1558 = vmatprep.subr.mxu0 0.0
    %1559 = vmatpush1.xpose.msra.mxu0 0.0
    %1560 = vmatprep.subr.mxu0 0.0
    %1561 = vmatpush1.xpose.msra.mxu0 0.0
    %1562 = vmatprep.subr.mxu0 0.0
    %1563 = vmatpush1.xpose.msra.mxu0 0.0
    %1564 = vmatprep.subr.mxu0 0.0
    %1565 = vmatpush1.xpose.msra.mxu0 0.0
    %1566 = vmatprep.subr.mxu0 0.0
    %1567 = vmatpush1.xpose.msra.mxu0 0.0
    %1568 = vmatprep.subr.mxu0 0.0
    %1569 = vmatpush1.xpose.msra.mxu0 0.0
    %1570 = vmatprep.subr.mxu0 0.0
    %1571 = vmatpush1.xpose.msra.mxu0 0.0
    %1572 = vmatprep.subr.mxu0 0.0
    %1573 = vmatpush1.xpose.msra.mxu0 0.0
    %1574 = vmatprep.subr.mxu0 0.0
    %1575 = vmatpush1.xpose.msra.mxu0 0.0
    %1576 = vmatprep.subr.mxu0 0.0
    %1577 = vmatpush1.xpose.msra.mxu0 0.0
    %1578 = vmatprep.subr.mxu0 0.0
    %1579 = vmatpush1.xpose.msra.mxu0 0.0
    %1580 = vmatprep.subr.mxu0 0.0
    %1581 = vmatpush1.xpose.msra.mxu0 0.0
    %1582 = vmatprep.subr.mxu0 0.0
    %1583 = vmatpush1.xpose.msra.mxu0 0.0
    %1584 = vmatprep.subr.mxu0 0.0
    %1585 = vmatpush1.xpose.msra.mxu0 0.0
    %1586 = vmatprep.subr.mxu0 0.0
    %1587 = vmatpush1.xpose.msra.mxu0 0.0
    %1588 = vmatprep.subr.mxu0 0.0
    %1589 = vmatpush1.xpose.msra.mxu0 0.0
    %1590 = vmatprep.subr.mxu0 0.0
    %1591 = vmatpush1.xpose.msra.mxu0 0.0
    %1592 = vmatprep.subr.mxu0 0.0
    %1593 = vmatpush1.xpose.msra.mxu0 0.0
    %1594 = vmatprep.subr.mxu0 0.0
    %1595 = vmatpush1.xpose.msra.mxu0 0.0
    %1596 = vmatprep.subr.mxu0 0.0
    %1597 = vmatpush1.xpose.msra.mxu0 0.0
    %1598 = vmatprep.subr.mxu0 0.0
    %1599 = vmatpush1.xpose.msra.mxu0 0.0
    %1600 = vmatprep.subr.mxu0 0.0
    %1601 = vmatpush1.xpose.msra.mxu0 0.0
    %1602 = vmatprep.subr.mxu0 0.0
    %1603 = vmatpush1.xpose.msra.mxu0 0.0
    %1604 = vmatprep.subr.mxu0 0.0
    %1605 = vmatpush1.xpose.msra.mxu0 0.0
    %1606 = vmatprep.subr.mxu0 0.0
    %1607 = vmatpush1.xpose.msra.mxu0 0.0
    %1608 = vmatprep.subr.mxu0 0.0
    %1609 = vmatpush1.xpose.msra.mxu0 0.0
    %1610 = vmatprep.subr.mxu0 0.0
    %1611 = vmatpush1.xpose.msra.mxu0 0.0
    %1612 = vmatprep.subr.mxu0 0.0
    %1613 = vmatpush1.xpose.msra.mxu0 0.0
    %1614 = vmatprep.mubr.f32.mxu0 0.0
    %1615 = vmatmul.mubr.f32.gmra.mrb[0].mxu0 %v1542
    %v1616 = vpop.f32.mrb[0].mxu0
    %v1617 = vadd.f32 0.0, %v1616
    %v1618 = vpop.f32.mrb[0].mxu0
    %1619 = vmatprep.mubr.f32.mxu0 0.0
    %1620 = vmatmul.mubr.f32.gmra.mrb[0].mxu0 %v1544
    %v1621 = vpop.f32.mrb[0].mxu0
    %v1622 = vadd.f32 0.0, %v1621
    %v1623 = vpop.f32.mrb[0].mxu0
    %1624 = vdwg.mxu0
    %1625 = vrot.lane.b32.xlu0 %v1361, 96
    %v1626 = vpop.permute.xlu0 %1625
    %1627 = vrot.lane.b32.xlu0 %v1363, 96
    %v1628 = vpop.permute.xlu0 %1627
    %v1629 = vsel %vm167, %v1361, 0
    %v1631 = vsel %vm167, %v1363, 0
    %v1633 = vsel %vm167, %v1626, 0
    %v1635 = vsel %vm167, %v1628, 0
    %1637 = vmatprep.subr.mxu0 0.0
    %1638 = vmatpush1.xpose.msra.mxu0 %v1633
    %1639 = vmatprep.subr.mxu0 0.0
    %1640 = vmatpush1.xpose.msra.mxu0 %v1635
    %1641 = vmatprep.subr.mxu0 0.0
    %1642 = vmatpush1.xpose.msra.mxu0 0.0
    %1643 = vmatprep.subr.mxu0 0.0
    %1644 = vmatpush1.xpose.msra.mxu0 0.0
    %1645 = vmatprep.subr.mxu0 0.0
    %1646 = vmatpush1.xpose.msra.mxu0 0.0
    %1647 = vmatprep.subr.mxu0 0.0
    %1648 = vmatpush1.xpose.msra.mxu0 0.0
    %1649 = vmatprep.subr.mxu0 0.0
    %1650 = vmatpush1.xpose.msra.mxu0 0.0
    %1651 = vmatprep.subr.mxu0 0.0
    %1652 = vmatpush1.xpose.msra.mxu0 0.0
    %1653 = vmatprep.subr.mxu0 0.0
    %1654 = vmatpush1.xpose.msra.mxu0 0.0
    %1655 = vmatprep.subr.mxu0 0.0
    %1656 = vmatpush1.xpose.msra.mxu0 0.0
    %1657 = vmatprep.subr.mxu0 0.0
    %1658 = vmatpush1.xpose.msra.mxu0 0.0
    %1659 = vmatprep.subr.mxu0 0.0
    %1660 = vmatpush1.xpose.msra.mxu0 0.0
    %1661 = vmatprep.subr.mxu0 0.0
    %1662 = vmatpush1.xpose.msra.mxu0 0.0
    %1663 = vmatprep.subr.mxu0 0.0
    %1664 = vmatpush1.xpose.msra.mxu0 0.0
    %1665 = vmatprep.subr.mxu0 0.0
    %1666 = vmatpush1.xpose.msra.mxu0 0.0
    %1667 = vmatprep.subr.mxu0 0.0
    %1668 = vmatpush1.xpose.msra.mxu0 0.0
    %1669 = vmatprep.subr.mxu0 0.0
    %1670 = vmatpush1.xpose.msra.mxu0 0.0
    %1671 = vmatprep.subr.mxu0 0.0
    %1672 = vmatpush1.xpose.msra.mxu0 0.0
    %1673 = vmatprep.subr.mxu0 0.0
    %1674 = vmatpush1.xpose.msra.mxu0 0.0
    %1675 = vmatprep.subr.mxu0 0.0
    %1676 = vmatpush1.xpose.msra.mxu0 0.0
    %1677 = vmatprep.subr.mxu0 0.0
    %1678 = vmatpush1.xpose.msra.mxu0 0.0
    %1679 = vmatprep.subr.mxu0 0.0
    %1680 = vmatpush1.xpose.msra.mxu0 0.0
    %1681 = vmatprep.subr.mxu0 0.0
    %1682 = vmatpush1.xpose.msra.mxu0 0.0
    %1683 = vmatprep.subr.mxu0 0.0
    %1684 = vmatpush1.xpose.msra.mxu0 0.0
    %1685 = vmatprep.subr.mxu0 0.0
    %1686 = vmatpush1.xpose.msra.mxu0 0.0
    %1687 = vmatprep.subr.mxu0 0.0
    %1688 = vmatpush1.xpose.msra.mxu0 0.0
    %1689 = vmatprep.subr.mxu0 0.0
    %1690 = vmatpush1.xpose.msra.mxu0 0.0
    %1691 = vmatprep.subr.mxu0 0.0
    %1692 = vmatpush1.xpose.msra.mxu0 0.0
    %1693 = vmatprep.subr.mxu0 0.0
    %1694 = vmatpush1.xpose.msra.mxu0 0.0
    %1695 = vmatprep.subr.mxu0 0.0
    %1696 = vmatpush1.xpose.msra.mxu0 0.0
    %1697 = vmatprep.subr.mxu0 0.0
    %1698 = vmatpush1.xpose.msra.mxu0 0.0
    %1699 = vmatprep.subr.mxu0 0.0
    %1700 = vmatpush1.xpose.msra.mxu0 0.0
    %1701 = vmatprep.mubr.f32.mxu0 0.0
    %1702 = vmatmul.mubr.f32.gmra.mrb[0].mxu0 %v1629
    %v1703 = vpop.f32.mrb[0].mxu0
    %v1704 = vadd.f32 0.0, %v1703
    %v1705 = vpop.f32.mrb[0].mxu0
    %1706 = vmatprep.mubr.f32.mxu0 0.0
    %1707 = vmatmul.mubr.f32.gmra.mrb[0].mxu0 %v1631
    %v1708 = vpop.f32.mrb[0].mxu0
    %v1709 = vadd.f32 0.0, %v1708
    %v1710 = vpop.f32.mrb[0].mxu0
    %1711 = vdwg.mxu0
    %v1712 = vmax.f32 %v1443, -5.0
    %v1713 = vmax.f32 %v1448, -5.0
    %v1714 = vmax.f32 %v1530, -5.0
    %v1715 = vmax.f32 %v1535, -5.0
    %v1716 = vmax.f32 %v1617, -5.0
    %v1717 = vmax.f32 %v1622, -5.0
    %v1718 = vmax.f32 %v1704, -5.0
    %v1719 = vmax.f32 %v1709, -5.0
    %v1720 = vmin.f32 %v1712, 5.0
    %v1721 = vmin.f32 %v1713, 5.0
    %v1722 = vmin.f32 %v1714, 5.0
    %v1723 = vmin.f32 %v1715, 5.0
    %v1724 = vmin.f32 %v1716, 5.0
    %v1725 = vmin.f32 %v1717, 5.0
    %v1726 = vmin.f32 %v1718, 5.0
    %v1727 = vmin.f32 %v1719, 5.0
    %v1728 = vmul.f32 %v1720, 1.442695
    %v1729 = vpow.pop %v1728
    %v1730 = vmul.f32 %v1721, 1.442695
    %v1731 = vpow.pop %v1730
    %v1732 = vmul.f32 %v1722, 1.442695
    %v1733 = vpow.pop %v1732
    %v1734 = vmul.f32 %v1723, 1.442695
    %v1735 = vpow.pop %v1734
    %v1736 = vmul.f32 %v1724, 1.442695
    %v1737 = vpow.pop %v1736
    %v1738 = vmul.f32 %v1725, 1.442695
    %v1739 = vpow.pop %v1738
    %v1740 = vmul.f32 %v1726, 1.442695
    %v1741 = vpow.pop %v1740
    %v1742 = vmul.f32 %v1727, 1.442695
    %v1743 = vpow.pop %v1742
    %v1744 = vmul.f32 %v1729, %v547
    %v1745 = vmul.f32 %v1731, %v549
    %v1746 = vmul.f32 %v1733, %v547
    %v1747 = vmul.f32 %v1735, %v549
    %v1748 = vmul.f32 %v1737, %v547
    %v1749 = vmul.f32 %v1739, %v549
    %v1750 = vmul.f32 %v1741, %v547
    %v1751 = vmul.f32 %v1743, %v549
    %v1752 = vsel %vm42, %v1744, 0.0
    %1753 = vadd.xlane.f32.xlu0 %v1752
    %v1754 = vpop.xlane.xlu0 %1753
    %v1755 = vsel %vm42, %v1745, 0.0
    %1756 = vadd.xlane.f32.xlu0 %v1755
    %v1757 = vpop.xlane.xlu0 %1756
    %v1758 = vsel %vm42, %v1746, 0.0
    %1759 = vadd.xlane.f32.xlu0 %v1758
    %v1760 = vpop.xlane.xlu0 %1759
    %v1761 = vsel %vm42, %v1747, 0.0
    %1762 = vadd.xlane.f32.xlu0 %v1761
    %v1763 = vpop.xlane.xlu0 %1762
    %v1764 = vsel %vm42, %v1748, 0.0
    %1765 = vadd.xlane.f32.xlu0 %v1764
    %v1766 = vpop.xlane.xlu0 %1765
    %v1767 = vsel %vm42, %v1749, 0.0
    %1768 = vadd.xlane.f32.xlu0 %v1767
    %v1769 = vpop.xlane.xlu0 %1768
    %v1770 = vsel %vm42, %v1750, 0.0
    %1771 = vadd.xlane.f32.xlu0 %v1770
    %v1772 = vpop.xlane.xlu0 %1771
    %v1773 = vsel %vm42, %v1751, 0.0
    %1774 = vadd.xlane.f32.xlu0 %v1773
    %v1775 = vpop.xlane.xlu0 %1774
    %v1776 = vadd.f32 %v1754, 1e-06
    %v1777 = vadd.f32 %v1757, 1e-06
    %v1778 = vadd.f32 %v1760, 1e-06
    %v1779 = vadd.f32 %v1763, 1e-06
    %v1780 = vadd.f32 %v1766, 1e-06
    %v1781 = vadd.f32 %v1769, 1e-06
    %v1782 = vadd.f32 %v1772, 1e-06
    %v1783 = vadd.f32 %v1775, 1e-06
    %1784 = vrot.lane.b32.xlu0 %v1344, 64
    %v1785 = vpop.permute.xlu0 %1784
    %1786 = vrot.lane.b32.xlu0 %v1347, 64
    %v1787 = vpop.permute.xlu0 %1786
    %v1791 = vsel %vm42, %v1744, 0
    %v1794 = vsel %vm42, %v1745, 0
    %1796 = vmatprep.subr.mxu0 0.0
    %1797 = vmatpush1.msra.mxu0 %v1785
    %1798 = vmatprep.subr.mxu0 0.0
    %1799 = vmatpush1.msra.mxu0 %v1787
    %1800 = vmatprep.subr.mxu0 0.0
    %1801 = vmatpush1.msra.mxu0 0.0
    %1802 = vmatprep.subr.mxu0 0.0
    %1803 = vmatpush1.msra.mxu0 0.0
    %1804 = vmatprep.subr.mxu0 0.0
    %1805 = vmatpush1.msra.mxu0 0.0
    %1806 = vmatprep.subr.mxu0 0.0
    %1807 = vmatpush1.msra.mxu0 0.0
    %1808 = vmatprep.subr.mxu0 0.0
    %1809 = vmatpush1.msra.mxu0 0.0
    %1810 = vmatprep.subr.mxu0 0.0
    %1811 = vmatpush1.msra.mxu0 0.0
    %1812 = vmatprep.subr.mxu0 0.0
    %1813 = vmatpush1.msra.mxu0 0.0
    %1814 = vmatprep.subr.mxu0 0.0
    %1815 = vmatpush1.msra.mxu0 0.0
    %1816 = vmatprep.subr.mxu0 0.0
    %1817 = vmatpush1.msra.mxu0 0.0
    %1818 = vmatprep.subr.mxu0 0.0
    %1819 = vmatpush1.msra.mxu0 0.0
    %1820 = vmatprep.subr.mxu0 0.0
    %1821 = vmatpush1.msra.mxu0 0.0
    %1822 = vmatprep.subr.mxu0 0.0
    %1823 = vmatpush1.msra.mxu0 0.0
    %1824 = vmatprep.subr.mxu0 0.0
    %1825 = vmatpush1.msra.mxu0 0.0
    %1826 = vmatprep.subr.mxu0 0.0
    %1827 = vmatpush1.msra.mxu0 0.0
    %1828 = vmatprep.subr.mxu0 0.0
    %1829 = vmatpush1.msra.mxu0 0.0
    %1830 = vmatprep.subr.mxu0 0.0
    %1831 = vmatpush1.msra.mxu0 0.0
    %1832 = vmatprep.subr.mxu0 0.0
    %1833 = vmatpush1.msra.mxu0 0.0
    %1834 = vmatprep.subr.mxu0 0.0
    %1835 = vmatpush1.msra.mxu0 0.0
    %1836 = vmatprep.subr.mxu0 0.0
    %1837 = vmatpush1.msra.mxu0 0.0
    %1838 = vmatprep.subr.mxu0 0.0
    %1839 = vmatpush1.msra.mxu0 0.0
    %1840 = vmatprep.subr.mxu0 0.0
    %1841 = vmatpush1.msra.mxu0 0.0
    %1842 = vmatprep.subr.mxu0 0.0
    %1843 = vmatpush1.msra.mxu0 0.0
    %1844 = vmatprep.subr.mxu0 0.0
    %1845 = vmatpush1.msra.mxu0 0.0
    %1846 = vmatprep.subr.mxu0 0.0
    %1847 = vmatpush1.msra.mxu0 0.0
    %1848 = vmatprep.subr.mxu0 0.0
    %1849 = vmatpush1.msra.mxu0 0.0
    %1850 = vmatprep.subr.mxu0 0.0
    %1851 = vmatpush1.msra.mxu0 0.0
    %1852 = vmatprep.subr.mxu0 0.0
    %1853 = vmatpush1.msra.mxu0 0.0
    %1854 = vmatprep.subr.mxu0 0.0
    %1855 = vmatpush1.msra.mxu0 0.0
    %1856 = vmatprep.subr.mxu0 0.0
    %1857 = vmatpush1.msra.mxu0 0.0
    %1858 = vmatprep.subr.mxu0 0.0
    %1859 = vmatpush1.msra.mxu0 0.0
    %1860 = vmatprep.mubr.f32.mxu0 0.0
    %1861 = vmatmul.mubr.f32.gmra.mrb[0].mxu0 %v1791
    %v1862 = vpop.f32.mrb[0].mxu0
    %v1863 = vadd.f32 0.0, %v1862
    %v1864 = vpop.f32.mrb[0].mxu0
    %1865 = vmatprep.mubr.f32.mxu0 0.0
    %1866 = vmatmul.mubr.f32.gmra.mrb[0].mxu0 %v1794
    %v1867 = vpop.f32.mrb[0].mxu0
    %v1868 = vadd.f32 0.0, %v1867
    %v1869 = vpop.f32.mrb[0].mxu0
    %1870 = vdwg.mxu0
    %1871 = vrot.lane.b32.xlu0 %v1353, 64
    %v1872 = vpop.permute.xlu0 %1871
    %1873 = vrot.lane.b32.xlu0 %v1355, 64
    %v1874 = vpop.permute.xlu0 %1873
    %v1878 = vsel %vm42, %v1746, 0
    %v1881 = vsel %vm42, %v1747, 0
    %1883 = vmatprep.subr.mxu0 0.0
    %1884 = vmatpush1.msra.mxu0 %v1872
    %1885 = vmatprep.subr.mxu0 0.0
    %1886 = vmatpush1.msra.mxu0 %v1874
    %1887 = vmatprep.subr.mxu0 0.0
    %1888 = vmatpush1.msra.mxu0 0.0
    %1889 = vmatprep.subr.mxu0 0.0
    %1890 = vmatpush1.msra.mxu0 0.0
    %1891 = vmatprep.subr.mxu0 0.0
    %1892 = vmatpush1.msra.mxu0 0.0
    %1893 = vmatprep.subr.mxu0 0.0
    %1894 = vmatpush1.msra.mxu0 0.0
    %1895 = vmatprep.subr.mxu0 0.0
    %1896 = vmatpush1.msra.mxu0 0.0
    %1897 = vmatprep.subr.mxu0 0.0
    %1898 = vmatpush1.msra.mxu0 0.0
    %1899 = vmatprep.subr.mxu0 0.0
    %1900 = vmatpush1.msra.mxu0 0.0
    %1901 = vmatprep.subr.mxu0 0.0
    %1902 = vmatpush1.msra.mxu0 0.0
    %1903 = vmatprep.subr.mxu0 0.0
    %1904 = vmatpush1.msra.mxu0 0.0
    %1905 = vmatprep.subr.mxu0 0.0
    %1906 = vmatpush1.msra.mxu0 0.0
    %1907 = vmatprep.subr.mxu0 0.0
    %1908 = vmatpush1.msra.mxu0 0.0
    %1909 = vmatprep.subr.mxu0 0.0
    %1910 = vmatpush1.msra.mxu0 0.0
    %1911 = vmatprep.subr.mxu0 0.0
    %1912 = vmatpush1.msra.mxu0 0.0
    %1913 = vmatprep.subr.mxu0 0.0
    %1914 = vmatpush1.msra.mxu0 0.0
    %1915 = vmatprep.subr.mxu0 0.0
    %1916 = vmatpush1.msra.mxu0 0.0
    %1917 = vmatprep.subr.mxu0 0.0
    %1918 = vmatpush1.msra.mxu0 0.0
    %1919 = vmatprep.subr.mxu0 0.0
    %1920 = vmatpush1.msra.mxu0 0.0
    %1921 = vmatprep.subr.mxu0 0.0
    %1922 = vmatpush1.msra.mxu0 0.0
    %1923 = vmatprep.subr.mxu0 0.0
    %1924 = vmatpush1.msra.mxu0 0.0
    %1925 = vmatprep.subr.mxu0 0.0
    %1926 = vmatpush1.msra.mxu0 0.0
    %1927 = vmatprep.subr.mxu0 0.0
    %1928 = vmatpush1.msra.mxu0 0.0
    %1929 = vmatprep.subr.mxu0 0.0
    %1930 = vmatpush1.msra.mxu0 0.0
    %1931 = vmatprep.subr.mxu0 0.0
    %1932 = vmatpush1.msra.mxu0 0.0
    %1933 = vmatprep.subr.mxu0 0.0
    %1934 = vmatpush1.msra.mxu0 0.0
    %1935 = vmatprep.subr.mxu0 0.0
    %1936 = vmatpush1.msra.mxu0 0.0
    %1937 = vmatprep.subr.mxu0 0.0
    %1938 = vmatpush1.msra.mxu0 0.0
    %1939 = vmatprep.subr.mxu0 0.0
    %1940 = vmatpush1.msra.mxu0 0.0
    %1941 = vmatprep.subr.mxu0 0.0
    %1942 = vmatpush1.msra.mxu0 0.0
    %1943 = vmatprep.subr.mxu0 0.0
    %1944 = vmatpush1.msra.mxu0 0.0
    %1945 = vmatprep.subr.mxu0 0.0
    %1946 = vmatpush1.msra.mxu0 0.0
    %1947 = vmatprep.mubr.f32.mxu0 0.0
    %1948 = vmatmul.mubr.f32.gmra.mrb[0].mxu0 %v1878
    %v1949 = vpop.f32.mrb[0].mxu0
    %v1950 = vadd.f32 0.0, %v1949
    %v1951 = vpop.f32.mrb[0].mxu0
    %1952 = vmatprep.mubr.f32.mxu0 0.0
    %1953 = vmatmul.mubr.f32.gmra.mrb[0].mxu0 %v1881
    %v1954 = vpop.f32.mrb[0].mxu0
    %v1955 = vadd.f32 0.0, %v1954
    %v1956 = vpop.f32.mrb[0].mxu0
    %1957 = vdwg.mxu0
    %1958 = vrot.lane.b32.xlu0 %v1357, 64
    %v1959 = vpop.permute.xlu0 %1958
    %1960 = vrot.lane.b32.xlu0 %v1359, 64
    %v1961 = vpop.permute.xlu0 %1960
    %v1965 = vsel %vm42, %v1748, 0
    %v1968 = vsel %vm42, %v1749, 0
    %1970 = vmatprep.subr.mxu0 0.0
    %1971 = vmatpush1.msra.mxu0 %v1959
    %1972 = vmatprep.subr.mxu0 0.0
    %1973 = vmatpush1.msra.mxu0 %v1961
    %1974 = vmatprep.subr.mxu0 0.0
    %1975 = vmatpush1.msra.mxu0 0.0
    %1976 = vmatprep.subr.mxu0 0.0
    %1977 = vmatpush1.msra.mxu0 0.0
    %1978 = vmatprep.subr.mxu0 0.0
    %1979 = vmatpush1.msra.mxu0 0.0
    %1980 = vmatprep.subr.mxu0 0.0
    %1981 = vmatpush1.msra.mxu0 0.0
    %1982 = vmatprep.subr.mxu0 0.0
    %1983 = vmatpush1.msra.mxu0 0.0
    %1984 = vmatprep.subr.mxu0 0.0
    %1985 = vmatpush1.msra.mxu0 0.0
    %1986 = vmatprep.subr.mxu0 0.0
    %1987 = vmatpush1.msra.mxu0 0.0
    %1988 = vmatprep.subr.mxu0 0.0
    %1989 = vmatpush1.msra.mxu0 0.0
    %1990 = vmatprep.subr.mxu0 0.0
    %1991 = vmatpush1.msra.mxu0 0.0
    %1992 = vmatprep.subr.mxu0 0.0
    %1993 = vmatpush1.msra.mxu0 0.0
    %1994 = vmatprep.subr.mxu0 0.0
    %1995 = vmatpush1.msra.mxu0 0.0
    %1996 = vmatprep.subr.mxu0 0.0
    %1997 = vmatpush1.msra.mxu0 0.0
    %1998 = vmatprep.subr.mxu0 0.0
    %1999 = vmatpush1.msra.mxu0 0.0
    %2000 = vmatprep.subr.mxu0 0.0
    %2001 = vmatpush1.msra.mxu0 0.0
    %2002 = vmatprep.subr.mxu0 0.0
    %2003 = vmatpush1.msra.mxu0 0.0
    %2004 = vmatprep.subr.mxu0 0.0
    %2005 = vmatpush1.msra.mxu0 0.0
    %2006 = vmatprep.subr.mxu0 0.0
    %2007 = vmatpush1.msra.mxu0 0.0
    %2008 = vmatprep.subr.mxu0 0.0
    %2009 = vmatpush1.msra.mxu0 0.0
    %2010 = vmatprep.subr.mxu0 0.0
    %2011 = vmatpush1.msra.mxu0 0.0
    %2012 = vmatprep.subr.mxu0 0.0
    %2013 = vmatpush1.msra.mxu0 0.0
    %2014 = vmatprep.subr.mxu0 0.0
    %2015 = vmatpush1.msra.mxu0 0.0
    %2016 = vmatprep.subr.mxu0 0.0
    %2017 = vmatpush1.msra.mxu0 0.0
    %2018 = vmatprep.subr.mxu0 0.0
    %2019 = vmatpush1.msra.mxu0 0.0
    %2020 = vmatprep.subr.mxu0 0.0
    %2021 = vmatpush1.msra.mxu0 0.0
    %2022 = vmatprep.subr.mxu0 0.0
    %2023 = vmatpush1.msra.mxu0 0.0
    %2024 = vmatprep.subr.mxu0 0.0
    %2025 = vmatpush1.msra.mxu0 0.0
    %2026 = vmatprep.subr.mxu0 0.0
    %2027 = vmatpush1.msra.mxu0 0.0
    %2028 = vmatprep.subr.mxu0 0.0
    %2029 = vmatpush1.msra.mxu0 0.0
    %2030 = vmatprep.subr.mxu0 0.0
    %2031 = vmatpush1.msra.mxu0 0.0
    %2032 = vmatprep.subr.mxu0 0.0
    %2033 = vmatpush1.msra.mxu0 0.0
    %2034 = vmatprep.mubr.f32.mxu0 0.0
    %2035 = vmatmul.mubr.f32.gmra.mrb[0].mxu0 %v1965
    %v2036 = vpop.f32.mrb[0].mxu0
    %v2037 = vadd.f32 0.0, %v2036
    %v2038 = vpop.f32.mrb[0].mxu0
    %2039 = vmatprep.mubr.f32.mxu0 0.0
    %2040 = vmatmul.mubr.f32.gmra.mrb[0].mxu0 %v1968
    %v2041 = vpop.f32.mrb[0].mxu0
    %v2042 = vadd.f32 0.0, %v2041
    %v2043 = vpop.f32.mrb[0].mxu0
    %2044 = vdwg.mxu0
    %2045 = vrot.lane.b32.xlu0 %v1361, 64
    %v2046 = vpop.permute.xlu0 %2045
    %2047 = vrot.lane.b32.xlu0 %v1363, 64
    %v2048 = vpop.permute.xlu0 %2047
    %v2052 = vsel %vm42, %v1750, 0
    %v2055 = vsel %vm42, %v1751, 0
    %2057 = vmatprep.subr.mxu0 0.0
    %2058 = vmatpush1.msra.mxu0 %v2046
    %2059 = vmatprep.subr.mxu0 0.0
    %2060 = vmatpush1.msra.mxu0 %v2048
    %2061 = vmatprep.subr.mxu0 0.0
    %2062 = vmatpush1.msra.mxu0 0.0
    %2063 = vmatprep.subr.mxu0 0.0
    %2064 = vmatpush1.msra.mxu0 0.0
    %2065 = vmatprep.subr.mxu0 0.0
    %2066 = vmatpush1.msra.mxu0 0.0
    %2067 = vmatprep.subr.mxu0 0.0
    %2068 = vmatpush1.msra.mxu0 0.0
    %2069 = vmatprep.subr.mxu0 0.0
    %2070 = vmatpush1.msra.mxu0 0.0
    %2071 = vmatprep.subr.mxu0 0.0
    %2072 = vmatpush1.msra.mxu0 0.0
    %2073 = vmatprep.subr.mxu0 0.0
    %2074 = vmatpush1.msra.mxu0 0.0
    %2075 = vmatprep.subr.mxu0 0.0
    %2076 = vmatpush1.msra.mxu0 0.0
    %2077 = vmatprep.subr.mxu0 0.0
    %2078 = vmatpush1.msra.mxu0 0.0
    %2079 = vmatprep.subr.mxu0 0.0
    %2080 = vmatpush1.msra.mxu0 0.0
    %2081 = vmatprep.subr.mxu0 0.0
    %2082 = vmatpush1.msra.mxu0 0.0
    %2083 = vmatprep.subr.mxu0 0.0
    %2084 = vmatpush1.msra.mxu0 0.0
    %2085 = vmatprep.subr.mxu0 0.0
    %2086 = vmatpush1.msra.mxu0 0.0
    %2087 = vmatprep.subr.mxu0 0.0
    %2088 = vmatpush1.msra.mxu0 0.0
    %2089 = vmatprep.subr.mxu0 0.0
    %2090 = vmatpush1.msra.mxu0 0.0
    %2091 = vmatprep.subr.mxu0 0.0
    %2092 = vmatpush1.msra.mxu0 0.0
    %2093 = vmatprep.subr.mxu0 0.0
    %2094 = vmatpush1.msra.mxu0 0.0
    %2095 = vmatprep.subr.mxu0 0.0
    %2096 = vmatpush1.msra.mxu0 0.0
    %2097 = vmatprep.subr.mxu0 0.0
    %2098 = vmatpush1.msra.mxu0 0.0
    %2099 = vmatprep.subr.mxu0 0.0
    %2100 = vmatpush1.msra.mxu0 0.0
    %2101 = vmatprep.subr.mxu0 0.0
    %2102 = vmatpush1.msra.mxu0 0.0
    %2103 = vmatprep.subr.mxu0 0.0
    %2104 = vmatpush1.msra.mxu0 0.0
    %2105 = vmatprep.subr.mxu0 0.0
    %2106 = vmatpush1.msra.mxu0 0.0
    %2107 = vmatprep.subr.mxu0 0.0
    %2108 = vmatpush1.msra.mxu0 0.0
    %2109 = vmatprep.subr.mxu0 0.0
    %2110 = vmatpush1.msra.mxu0 0.0
    %2111 = vmatprep.subr.mxu0 0.0
    %2112 = vmatpush1.msra.mxu0 0.0
    %2113 = vmatprep.subr.mxu0 0.0
    %2114 = vmatpush1.msra.mxu0 0.0
    %2115 = vmatprep.subr.mxu0 0.0
    %2116 = vmatpush1.msra.mxu0 0.0
    %2117 = vmatprep.subr.mxu0 0.0
    %2118 = vmatpush1.msra.mxu0 0.0
    %2119 = vmatprep.subr.mxu0 0.0
    %2120 = vmatpush1.msra.mxu0 0.0
    %2121 = vmatprep.mubr.f32.mxu0 0.0
    %2122 = vmatmul.mubr.f32.gmra.mrb[0].mxu0 %v2052
    %v2123 = vpop.f32.mrb[0].mxu0
    %v2124 = vadd.f32 0.0, %v2123
    %v2125 = vpop.f32.mrb[0].mxu0
    %2126 = vmatprep.mubr.f32.mxu0 0.0
    %2127 = vmatmul.mubr.f32.gmra.mrb[0].mxu0 %v2055
    %v2128 = vpop.f32.mrb[0].mxu0
    %v2129 = vadd.f32 0.0, %v2128
    %v2130 = vpop.f32.mrb[0].mxu0
    %2131 = vdwg.mxu0
    %v2132 = vrcp.pop %v1776
    %v2133 = vmul.f32 %v1863, %v2132
    %v2134 = vrcp.pop %v1777
    %v2135 = vmul.f32 %v1868, %v2134
    %v2136 = vrcp.pop %v1778
    %v2137 = vmul.f32 %v1950, %v2136
    %v2138 = vrcp.pop %v1779
    %v2139 = vmul.f32 %v1955, %v2138
    %v2140 = vrcp.pop %v1780
    %v2141 = vmul.f32 %v2037, %v2140
    %v2142 = vrcp.pop %v1781
    %v2143 = vmul.f32 %v2042, %v2142
    %v2144 = vrcp.pop %v1782
    %v2145 = vmul.f32 %v2124, %v2144
    %v2146 = vrcp.pop %v1783
    %v2147 = vmul.f32 %v2129, %v2146
    %2150 = vrot.lane.b32.xlu0 %v2137, 8
    %v2151 = vpop.permute.xlu0 %2150
    %2152 = vrot.lane.b32.xlu0 %v2139, 8
    %v2153 = vpop.permute.xlu0 %2152
    %2158 = vrot.lane.b32.xlu0 %v2141, 16
    %v2159 = vpop.permute.xlu0 %2158
    %2160 = vrot.lane.b32.xlu0 %v2143, 16
    %v2161 = vpop.permute.xlu0 %2160
    %2166 = vrot.lane.b32.xlu0 %v2145, 24
    %v2167 = vpop.permute.xlu0 %2166
    %2168 = vrot.lane.b32.xlu0 %v2147, 24
    %v2169 = vpop.permute.xlu0 %2168
    %v2172 = vsel %vm167, %v2133, %v2151
    %v2173 = vsel %vm167, %v2135, %v2153
    %v2174 = vsel %vm42, %v2172, %v2159
    %v2175 = vsel %vm42, %v2173, %v2161
    %v2176 = vsel %vm984, %v2174, %v2167
    %v2177 = vsel %vm984, %v2175, %v2169
    %v2178 = vpack.c.bf16 %v2177, %v2176
    %v2179 = vld [vmem:[#allocation2 + $0x68] sm:$0xf]
    %v2180 = vld [vmem:[#allocation2 + $0x6c] sm:$0xf]
    %v2181 = vld [vmem:[#allocation2 + $0x70] sm:$0xf]
    %v2182 = vld [vmem:[#allocation2 + $0x74] sm:$0xf]
    %v2183 = vld [vmem:[%s2 + $0x48] sm:$0x1]
    %v2184 = vlaneseq
    %v2185 = vshrl.u32 %v2184, 7
    %v2186 = vsub.s32 0, %v2185
    %v2187 = vrot.slane %v2183, %v2186
    %v2192 = vunpack.c.l.b16 %v2179
    %v2193 = vunpack.c.l.b16 %v2180
    %v2194 = vunpack.c.l.b16 %v2181
    %v2195 = vunpack.c.l.b16 %v2182
    %v2196 = vpack.c.b16 %v2193, %v2192
    %v2197 = vpack.c.b16 %v2195, %v2194
    %v2201 = vsel %vm104, %v2178, 0
    %2203 = vmatprep.subr.bf16.mxu0 0
    %2204 = vmatpush1.bf16.msra.mxu0 %v2196
    %2205 = vmatprep.subr.bf16.mxu0 0
    %2206 = vmatpush1.bf16.msra.mxu0 %v2197
    %2207 = vmatprep.subr.bf16.mxu0 0
    %2208 = vmatpush1.bf16.msra.mxu0 0
    %2209 = vmatprep.subr.bf16.mxu0 0
    %2210 = vmatpush1.bf16.msra.mxu0 0
    %2211 = vmatprep.subr.bf16.mxu0 0
    %2212 = vmatpush1.bf16.msra.mxu0 0
    %2213 = vmatprep.subr.bf16.mxu0 0
    %2214 = vmatpush1.bf16.msra.mxu0 0
    %2215 = vmatprep.subr.bf16.mxu0 0
    %2216 = vmatpush1.bf16.msra.mxu0 0
    %2217 = vmatprep.subr.bf16.mxu0 0
    %2218 = vmatpush1.bf16.msra.mxu0 0
    %2219 = vmatprep.subr.bf16.mxu0 0
    %2220 = vmatpush1.bf16.msra.mxu0 0
    %2221 = vmatprep.subr.bf16.mxu0 0
    %2222 = vmatpush1.bf16.msra.mxu0 0
    %2223 = vmatprep.subr.bf16.mxu0 0
    %2224 = vmatpush1.bf16.msra.mxu0 0
    %2225 = vmatprep.subr.bf16.mxu0 0
    %2226 = vmatpush1.bf16.msra.mxu0 0
    %2227 = vmatprep.subr.bf16.mxu0 0
    %2228 = vmatpush1.bf16.msra.mxu0 0
    %2229 = vmatprep.subr.bf16.mxu0 0
    %2230 = vmatpush1.bf16.msra.mxu0 0
    %2231 = vmatprep.subr.bf16.mxu0 0
    %2232 = vmatpush1.bf16.msra.mxu0 0
    %2233 = vmatprep.subr.bf16.mxu0 0
    %2234 = vmatpush1.bf16.msra.mxu0 0
    %2235 = vmatprep.mubr.bf16.mxu0 0
    %2236 = vmatmul.mubr.bf16.gmra.mrb[0].mxu0 %v2201
    %v2237 = vpop.f32.mrb[0].mxu0
    %v2238 = vadd.f32 %v2187, %v2237
    %v2239 = vpop.f32.mrb[0].mxu0
    %v2240 = vpop.f32.mrb[0].mxu0
    %v2241 = vadd.f32 %v2187, %v2240
    %v2242 = vpop.f32.mrb[0].mxu0
    %2243 = vdwg.mxu0
    %v2244 = vadd.f32 %v1287, %v2238
    %v2245 = vadd.f32 %v1288, %v2241
    %v2246 = vsel %vm104, %v2244, 0.0
    %2247 = vadd.xlane.f32.xlu0 %v2246
    %v2248 = vpop.xlane.xlu0 %2247
    %v2249 = vsel %vm104, %v2245, 0.0
    %2250 = vadd.xlane.f32.xlu0 %v2249
    %v2251 = vpop.xlane.xlu0 %2250
    %v2252 = vmul.f32 %v2248, %v1061
    %v2253 = vmul.f32 %v2251, %v1061
    %v2254 = vsub.f32 %v2244, %v2252
    %v2255 = vsub.f32 %v2245, %v2253
    %v2256 = vmul.f32 %v2254, %v2254
    %v2257 = vmul.f32 %v2255, %v2255
    %v2258 = vsel %vm104, %v2256, 0.0
    %2259 = vadd.xlane.f32.xlu0 %v2258
    %v2260 = vpop.xlane.xlu0 %2259
    %v2261 = vsel %vm104, %v2257, 0.0
    %2262 = vadd.xlane.f32.xlu0 %v2261
    %v2263 = vpop.xlane.xlu0 %2262
    %v2264 = vmul.f32 %v2260, %v1061
    %v2265 = vmul.f32 %v2263, %v1061
    %v2266 = vadd.f32 %v2264, 1e-05
    %v2267 = vadd.f32 %v2265, 1e-05
    %v2268 = vrsqrt.pop %v2266
    %v2269 = vrsqrt.pop %v2267
    %v2270 = vmul.f32 %v2254, %v2268
    %v2271 = vmul.f32 %v2255, %v2269
    %v2272 = vld [vmem:[%s2 + $0x50] sm:$0x1]
    %v2273 = vlaneseq
    %v2274 = vshrl.u32 %v2273, 7
    %v2275 = vsub.s32 0, %v2274
    %v2276 = vrot.slane %v2272, %v2275
    %v2277 = vmul.f32 %v2270, %v2276
    %v2278 = vmul.f32 %v2271, %v2276
    %v2279 = vld [vmem:[%s2 + $0x58] sm:$0x1]
    %v2280 = vlaneseq
    %v2281 = vshrl.u32 %v2280, 7
    %v2282 = vsub.s32 0, %v2281
    %v2283 = vrot.slane %v2279, %v2282
    %v2284 = vadd.f32 %v2277, %v2283
    %v2285 = vadd.f32 %v2278, %v2283
    %v2286 = vpack.c.bf16 %v2285, %v2284
    %v2287 = vld [vmem:[#allocation2 + $0x78] sm:$0xf]
    %v2288 = vld [vmem:[#allocation2 + $0x7c] sm:$0xf]
    %v2289 = vld [vmem:[#allocation2 + $0x80] sm:$0xf]
    %v2290 = vld [vmem:[#allocation2 + $0x84] sm:$0xf]
    %v2291 = vld [vmem:[%s2 + $0x60] sm:$0x1]
    %v2292 = vlaneseq
    %v2293 = vshrl.u32 %v2292, 7
    %v2294 = vsub.s32 0, %v2293
    %v2295 = vrot.slane %v2291, %v2294
    %v2300 = vunpack.c.l.b16 %v2287
    %v2301 = vunpack.c.l.b16 %v2288
    %v2302 = vunpack.c.l.b16 %v2289
    %v2303 = vunpack.c.l.b16 %v2290
    %v2304 = vpack.c.b16 %v2301, %v2300
    %v2305 = vpack.c.b16 %v2303, %v2302
    %v2309 = vsel %vm104, %v2286, 0
    %2311 = vmatprep.subr.bf16.mxu0 0
    %2312 = vmatpush1.bf16.msra.mxu0 %v2304
    %2313 = vmatprep.subr.bf16.mxu0 0
    %2314 = vmatpush1.bf16.msra.mxu0 %v2305
    %2315 = vmatprep.subr.bf16.mxu0 0
    %2316 = vmatpush1.bf16.msra.mxu0 0
    %2317 = vmatprep.subr.bf16.mxu0 0
    %2318 = vmatpush1.bf16.msra.mxu0 0
    %2319 = vmatprep.subr.bf16.mxu0 0
    %2320 = vmatpush1.bf16.msra.mxu0 0
    %2321 = vmatprep.subr.bf16.mxu0 0
    %2322 = vmatpush1.bf16.msra.mxu0 0
    %2323 = vmatprep.subr.bf16.mxu0 0
    %2324 = vmatpush1.bf16.msra.mxu0 0
    %2325 = vmatprep.subr.bf16.mxu0 0
    %2326 = vmatpush1.bf16.msra.mxu0 0
    %2327 = vmatprep.subr.bf16.mxu0 0
    %2328 = vmatpush1.bf16.msra.mxu0 0
    %2329 = vmatprep.subr.bf16.mxu0 0
    %2330 = vmatpush1.bf16.msra.mxu0 0
    %2331 = vmatprep.subr.bf16.mxu0 0
    %2332 = vmatpush1.bf16.msra.mxu0 0
    %2333 = vmatprep.subr.bf16.mxu0 0
    %2334 = vmatpush1.bf16.msra.mxu0 0
    %2335 = vmatprep.subr.bf16.mxu0 0
    %2336 = vmatpush1.bf16.msra.mxu0 0
    %2337 = vmatprep.subr.bf16.mxu0 0
    %2338 = vmatpush1.bf16.msra.mxu0 0
    %2339 = vmatprep.subr.bf16.mxu0 0
    %2340 = vmatpush1.bf16.msra.mxu0 0
    %2341 = vmatprep.subr.bf16.mxu0 0
    %2342 = vmatpush1.bf16.msra.mxu0 0
    %2343 = vmatprep.mubr.bf16.mxu0 0
    %2344 = vmatmul.mubr.bf16.gmra.mrb[0].mxu0 %v2309
    %v2345 = vpop.f32.mrb[0].mxu0
    %v2346 = vadd.f32 %v2295, %v2345
    %v2347 = vpop.f32.mrb[0].mxu0
    %v2348 = vpop.f32.mrb[0].mxu0
    %v2349 = vadd.f32 %v2295, %v2348
    %v2350 = vpop.f32.mrb[0].mxu0
    %2351 = vdwg.mxu0
    %v2352 = vmax.f32 %v2346, 0.0
    %v2353 = vmax.f32 %v2349, 0.0
    %v2354 = vpack.c.bf16 %v2353, %v2352
    %v2355 = vld [vmem:[#allocation2 + $0x88] sm:$0xf]
    %v2356 = vld [vmem:[#allocation2 + $0x8c] sm:$0xf]
    %v2357 = vld [vmem:[#allocation2 + $0x90] sm:$0xf]
    %v2358 = vld [vmem:[#allocation2 + $0x94] sm:$0xf]
    %v2359 = vld [vmem:[#allocation2 + $0x98] sm:$0xf]
    %v2360 = vld [vmem:[#allocation2 + $0x9c] sm:$0xf]
    %v2361 = vld [vmem:[#allocation2 + $0xa0] sm:$0xf]
    %v2362 = vld [vmem:[#allocation2 + $0xa4] sm:$0xf]
    %v2363 = vld [vmem:[%s2 + $0x68] sm:$0x1]
    %v2364 = vlaneseq
    %v2365 = vshrl.u32 %v2364, 7
    %v2366 = vsub.s32 0, %v2365
    %v2367 = vrot.slane %v2363, %v2366
    %v2376 = vunpack.c.l.b16 %v2355
    %v2377 = vunpack.c.l.b16 %v2356
    %v2378 = vunpack.c.l.b16 %v2357
    %v2379 = vunpack.c.l.b16 %v2358
    %v2380 = vunpack.c.l.b16 %v2359
    %v2381 = vunpack.c.l.b16 %v2360
    %v2382 = vunpack.c.l.b16 %v2361
    %v2383 = vunpack.c.l.b16 %v2362
    %v2384 = vpack.c.b16 %v2377, %v2376
    %v2385 = vpack.c.b16 %v2379, %v2378
    %v2386 = vpack.c.b16 %v2381, %v2380
    %v2387 = vpack.c.b16 %v2383, %v2382
    %v2393 = vsel %vm1202, %v2354, 0
    %2395 = vmatprep.subr.bf16.mxu0 0
    %2396 = vmatpush1.bf16.msra.mxu0 %v2384
    %2397 = vmatprep.subr.bf16.mxu0 0
    %2398 = vmatpush1.bf16.msra.mxu0 %v2385
    %2399 = vmatprep.subr.bf16.mxu0 0
    %2400 = vmatpush1.bf16.msra.mxu0 %v2386
    %2401 = vmatprep.subr.bf16.mxu0 0
    %2402 = vmatpush1.bf16.msra.mxu0 %v2387
    %2403 = vmatprep.subr.bf16.mxu0 0
    %2404 = vmatpush1.bf16.msra.mxu0 0
    %2405 = vmatprep.subr.bf16.mxu0 0
    %2406 = vmatpush1.bf16.msra.mxu0 0
    %2407 = vmatprep.subr.bf16.mxu0 0
    %2408 = vmatpush1.bf16.msra.mxu0 0
    %2409 = vmatprep.subr.bf16.mxu0 0
    %2410 = vmatpush1.bf16.msra.mxu0 0
    %2411 = vmatprep.subr.bf16.mxu0 0
    %2412 = vmatpush1.bf16.msra.mxu0 0
    %2413 = vmatprep.subr.bf16.mxu0 0
    %2414 = vmatpush1.bf16.msra.mxu0 0
    %2415 = vmatprep.subr.bf16.mxu0 0
    %2416 = vmatpush1.bf16.msra.mxu0 0
    %2417 = vmatprep.subr.bf16.mxu0 0
    %2418 = vmatpush1.bf16.msra.mxu0 0
    %2419 = vmatprep.subr.bf16.mxu0 0
    %2420 = vmatpush1.bf16.msra.mxu0 0
    %2421 = vmatprep.subr.bf16.mxu0 0
    %2422 = vmatpush1.bf16.msra.mxu0 0
    %2423 = vmatprep.subr.bf16.mxu0 0
    %2424 = vmatpush1.bf16.msra.mxu0 0
    %2425 = vmatprep.subr.bf16.mxu0 0
    %2426 = vmatpush1.bf16.msra.mxu0 0
    %2427 = vmatprep.mubr.bf16.mxu0 0
    %2428 = vmatmul.mubr.bf16.gmra.mrb[0].mxu0 %v2393
    %v2429 = vpop.f32.mrb[0].mxu0
    %v2430 = vadd.f32 %v2367, %v2429
    %v2431 = vpop.f32.mrb[0].mxu0
    %v2432 = vpop.f32.mrb[0].mxu0
    %v2433 = vadd.f32 %v2367, %v2432
    %v2434 = vpop.f32.mrb[0].mxu0
    %2435 = vdwg.mxu0
    %v2436 = vadd.f32 %v2284, %v2430
    %v2437 = vadd.f32 %v2285, %v2433
    %v2438 = vsel %vm104, %v2436, 0.0
    %2439 = vadd.xlane.f32.xlu0 %v2438
    %v2440 = vpop.xlane.xlu0 %2439
    %v2441 = vsel %vm104, %v2437, 0.0
    %2442 = vadd.xlane.f32.xlu0 %v2441
    %v2443 = vpop.xlane.xlu0 %2442
    %v2444 = vmul.f32 %v2440, %v1061
    %v2445 = vmul.f32 %v2443, %v1061
    %v2446 = vsub.f32 %v2436, %v2444
    %v2447 = vsub.f32 %v2437, %v2445
    %v2448 = vmul.f32 %v2446, %v2446
    %v2449 = vmul.f32 %v2447, %v2447
    %v2450 = vsel %vm104, %v2448, 0.0
    %2451 = vadd.xlane.f32.xlu0 %v2450
    %v2452 = vpop.xlane.xlu0 %2451
    %v2453 = vsel %vm104, %v2449, 0.0
    %2454 = vadd.xlane.f32.xlu0 %v2453
    %v2455 = vpop.xlane.xlu0 %2454
    %v2456 = vmul.f32 %v2452, %v1061
    %v2457 = vmul.f32 %v2455, %v1061
    %v2458 = vadd.f32 %v2456, 1e-05
    %v2459 = vadd.f32 %v2457, 1e-05
    %v2460 = vrsqrt.pop %v2458
    %v2461 = vrsqrt.pop %v2459
    %v2462 = vmul.f32 %v2446, %v2460
    %v2463 = vmul.f32 %v2447, %v2461
    %v2464 = vld [vmem:[%s2 + $0x70] sm:$0x1]
    %v2465 = vlaneseq
    %v2466 = vshrl.u32 %v2465, 7
    %v2467 = vsub.s32 0, %v2466
    %v2468 = vrot.slane %v2464, %v2467
    %v2469 = vmul.f32 %v2462, %v2468
    %v2470 = vmul.f32 %v2463, %v2468
    %v2471 = vld [vmem:[%s2 + $0x78] sm:$0x1]
    %v2472 = vlaneseq
    %v2473 = vshrl.u32 %v2472, 7
    %v2474 = vsub.s32 0, %v2473
    %v2475 = vrot.slane %v2471, %v2474
    %v2476 = vadd.f32 %v2469, %v2475
    %v2477 = vadd.f32 %v2470, %v2475
    %v2478 = vsel %vm104, %v2476, 0.0
    %v2479 = vrot.slane %v2478, 4
    %v2480 = vadd.f32 %v2478, %v2479
    %v2481 = vrot.slane %v2480, 2
    %v2482 = vadd.f32 %v2480, %v2481
    %v2483 = vrot.slane %v2482, 1
    %v2484 = vadd.f32 %v2482, %v2483
    %v2485 = vrcp.pop 8.0
    %v2486 = vmul.f32 %v2484, %v2485
    %v2487 = vsel %vm104, %v2477, 0.0
    %v2488 = vrot.slane %v2487, 4
    %v2489 = vadd.f32 %v2487, %v2488
    %v2490 = vrot.slane %v2489, 2
    %v2491 = vadd.f32 %v2489, %v2490
    %v2492 = vrot.slane %v2491, 1
    %v2493 = vadd.f32 %v2491, %v2492
    %v2494 = vmul.f32 %v2493, %v2485
    %vm2495 = vcmask 1040384
    %v2496 = vsel %vm2495, %v2486, %v2494
    %v2497 = vpack.c.bf16 %v2496, %v2496
    %v2498 = vld [vmem:[#allocation2 + $0xa8] sm:$0xf]
    %v2499 = vld [vmem:[#allocation2 + $0xac] sm:$0xf]
    %v2500 = vld [vmem:[#allocation2 + $0xb0] sm:$0xf]
    %v2501 = vld [vmem:[#allocation2 + $0xb4] sm:$0xf]
    %v2502 = vld [vmem:[%s2 + $0x80] sm:$0x1]
    %v2503 = vlaneseq
    %v2504 = vshrl.u32 %v2503, 7
    %v2505 = vsub.s32 0, %v2504
    %v2506 = vrot.slane %v2502, %v2505
    %v2511 = vunpack.c.l.b16 %v2498
    %v2512 = vunpack.c.l.b16 %v2499
    %v2513 = vunpack.c.l.b16 %v2500
    %v2514 = vunpack.c.l.b16 %v2501
    %v2515 = vpack.c.b16 %v2512, %v2511
    %v2516 = vpack.c.b16 %v2514, %v2513
    %v2520 = vsel %vm104, %v2497, 0
    %2522 = vmatprep.subr.bf16.mxu0 0
    %2523 = vmatpush1.bf16.msra.mxu0 %v2515
    %2524 = vmatprep.subr.bf16.mxu0 0
    %2525 = vmatpush1.bf16.msra.mxu0 %v2516
    %2526 = vmatprep.subr.bf16.mxu0 0
    %2527 = vmatpush1.bf16.msra.mxu0 0
    %2528 = vmatprep.subr.bf16.mxu0 0
    %2529 = vmatpush1.bf16.msra.mxu0 0
    %2530 = vmatprep.subr.bf16.mxu0 0
    %2531 = vmatpush1.bf16.msra.mxu0 0
    %2532 = vmatprep.subr.bf16.mxu0 0
    %2533 = vmatpush1.bf16.msra.mxu0 0
    %2534 = vmatprep.subr.bf16.mxu0 0
    %2535 = vmatpush1.bf16.msra.mxu0 0
    %2536 = vmatprep.subr.bf16.mxu0 0
    %2537 = vmatpush1.bf16.msra.mxu0 0
    %2538 = vmatprep.subr.bf16.mxu0 0
    %2539 = vmatpush1.bf16.msra.mxu0 0
    %2540 = vmatprep.subr.bf16.mxu0 0
    %2541 = vmatpush1.bf16.msra.mxu0 0
    %2542 = vmatprep.subr.bf16.mxu0 0
    %2543 = vmatpush1.bf16.msra.mxu0 0
    %2544 = vmatprep.subr.bf16.mxu0 0
    %2545 = vmatpush1.bf16.msra.mxu0 0
    %2546 = vmatprep.subr.bf16.mxu0 0
    %2547 = vmatpush1.bf16.msra.mxu0 0
    %2548 = vmatprep.subr.bf16.mxu0 0
    %2549 = vmatpush1.bf16.msra.mxu0 0
    %2550 = vmatprep.subr.bf16.mxu0 0
    %2551 = vmatpush1.bf16.msra.mxu0 0
    %2552 = vmatprep.subr.bf16.mxu0 0
    %2553 = vmatpush1.bf16.msra.mxu0 0
    %2554 = vmatprep.mubr.bf16.mxu0 0
    %2555 = vmatmul.mubr.bf16.gmra.mrb[0].mxu0 %v2520
    %v2556 = vpop.f32.mrb[0].mxu0
    %v2557 = vadd.f32 %v2506, %v2556
    %v2558 = vpop.f32.mrb[0].mxu0
    %v2559 = vpop.f32.mrb[0].mxu0
    %v2560 = vpop.f32.mrb[0].mxu0
    %2561 = vdwg.mxu0
    %2563 = vrot.lane.b32.xlu0 %v2557, 32
    %v2564 = vpop.permute.xlu0 %2563
    %v2566 = vsel %vm104, %v2496, %v2564
    %vm2567 = vcmask 287744
    %2568 = vst.msk [vmem:[%s3] sm:$0x3] %vm2567, %v2566
    // Predicated region
    $region18: #{graph_transformer_net_forward.1} parent=1 // pred_check
      _
    $region19: #{graph_transformer_net_forward.1} parent=1 // pred_check_branch
      %2570 = sbr.rel (0) target = $region21
    $region20: #{graph_transformer_net_forward.1} parent=1 // pred_region
      _
    $region21: #{graph_transformer_net_forward.1} parent=1 // pred_fallthru
      _
    // Predicated region
    $region22: #{graph_transformer_net_forward.1} parent=1 // pred_check
      _
    $region23: #{graph_transformer_net_forward.1} parent=1 // pred_check_branch
      %2572 = sbr.rel (0) target = $region25
    $region24: #{graph_transformer_net_forward.1} parent=1 // pred_region
      _
    $region25: #{graph_transformer_net_forward.1} parent=1 // pred_fallthru
      _
    %2573 = vsyncpa [#allocation3], 1

</llo_original>
